<compile_context>
chip_gen: v5e
topology: v5e:2x2
jax: 0.10.0
libtpu: 0.0.40
codegen_flags: <defaults>
</compile_context>

<pallas_src>
import functools
import re

import jax
import jax.numpy as jnp
from jax.experimental import pallas as pl
from jax.experimental.pallas import tpu as pltpu

LN_EPS = 1e-5


# ---------------------------------------------------------------------------
# Hardware introspection (generation-aware tiling / VMEM budget / tanh dtype)
# ---------------------------------------------------------------------------
def _tpu_generation():
    """Best-effort TPU generation (5, 6, 7, ...) from the device kind."""
    try:
        dev = jax.devices()[0]
        if dev.platform != "tpu":
            return None
        m = re.search(r"(\d+)", dev.device_kind)
        return int(m.group(1)) if m else None
    except Exception:
        return None


def _tpu_vmem_capacity_bytes(gen):
    """Per-core VMEM capacity: query Mosaic, fall back to a per-gen table."""
    try:
        return int(pltpu.get_tpu_info().vmem_capacity_bytes)
    except Exception:
        pass
    if gen is not None and gen <= 6:
        return 128 << 20          # v5e / v6e (and older)
    return 64 << 20               # v7x per-TensorCore (conservative default)


def _auto_tanh_dtype(gen=None):
    """bf16 tanh on bf16-capable EUP/VPU (v6e/v7x); f32 elsewhere (v5e)."""
    if gen is None:
        gen = _tpu_generation()
    return jnp.bfloat16 if (gen is not None and gen >= 6) else jnp.float32


# ---------------------------------------------------------------------------
# Kernel
# ---------------------------------------------------------------------------
def _disc_kernel(tanh_dtype, x_ref, w1_ref, cfeat_ref, w2_ref, w3_ref,
                 chid_ref, b4_ref, out_ref):
    """Fused trunk + net.  Matmuls take bf16 operands on the MXU and
    accumulate in f32; LayerNorm statistics stay in f32."""
    b1, gamma, beta = cfeat_ref[0:1, :], cfeat_ref[1:2, :], cfeat_ref[2:3, :]
    b2, b3, w4_row = chid_ref[0:1, :], chid_ref[1:2, :], chid_ref[2:3, :]

    # trunk: Linear(repr_dim, feature_dim) -> LayerNorm -> Tanh
    x = x_ref[...].astype(w1_ref.dtype)
    h = jnp.dot(x, w1_ref[...], preferred_element_type=jnp.float32) + b1

    # Two-pass LayerNorm statistics: var = E[(h - mean)^2] (no catastrophic
    # cancellation; matches PyTorch LayerNorm's biased variance).
    mean = jnp.mean(h, axis=-1, keepdims=True)
    hc = h - mean
    var = jnp.mean(hc * hc, axis=-1, keepdims=True)
    h = hc * jax.lax.rsqrt(var + LN_EPS) * gamma + beta
    # tanh in bf16 on bf16-capable EUPs (v6e/v7x); result feeds a bf16 matmul
    # anyway, so the cast is free.  f32 on v5e.
    h = jnp.tanh(h.astype(tanh_dtype))

    # net: Linear -> ReLU -> Linear -> ReLU
    h = jnp.dot(h.astype(w2_ref.dtype), w2_ref[...],
                preferred_element_type=jnp.float32) + b2
    h = jnp.maximum(h, 0.0)
    h = jnp.dot(h.astype(w3_ref.dtype), w3_ref[...],
                preferred_element_type=jnp.float32) + b3
    h = jnp.maximum(h, 0.0)

    # Final Linear(hidden, 1): contract the hidden axis of h against the
    # (1, hidden) weight row so the logits come out lane-dense as (1, tile_b)
    # -> unmasked store, no N=1 matmul, no (tile_b, 1) masked writeback.
    d = jax.lax.dot_general(w4_row, h, (((1,), (1,)), ((), ())),
                            preferred_element_type=jnp.float32)
    out_ref[...] = (d + b4_ref[0]).astype(out_ref.dtype)


# ---------------------------------------------------------------------------
# Tiling heuristic
# ---------------------------------------------------------------------------
def _pick_tile_b(B, repr_dim, feature_dim, hidden_dim, matmul_itemsize):
    """Generation-aware batch tile.

    * Single-TensorCore chips (v5e/v6e): whole batch in one grid step when the
      activation footprint fits the VMEM budget (no per-step overhead, weights
      are resident anyway).
    * v7x (2 TensorCores): prefer an even number of grid steps, ideally >= 4,
      so both cores are used and each core overlaps its x-tile DMA with
      compute.
    * Tiles are multiples of 128 rows (fills the MXU M dimension on 256-wide
      MXUs, keeps the lane-dense output block 128-aligned).
    """
    gen = _tpu_generation()
    vmem_cap = _tpu_vmem_capacity_bytes(gen)
    multi_core = gen is not None and gen >= 7

    # Single-buffered resident weights + packed constant rows.
    w_bytes = (repr_dim * feature_dim + feature_dim * hidden_dim
               + hidden_dim * hidden_dim) * matmul_itemsize
    w_bytes += (3 * feature_dim + 3 * hidden_dim) * 4
    # ~75% of capacity, minus weights, minus slack for compiler scratch.
    budget = max(int(vmem_cap) * 3 // 4 - w_bytes - (4 << 20), 2 << 20)
    # Per-row footprint: double-buffered x + out blocks + live f32 tiles.
    per_row = 2 * repr_dim * 4 + 2 * 4 + 6 * max(feature_dim, hidden_dim) * 4
    max_rows = int(min(budget // per_row, 4096, B))

    if max_rows >= B and not (multi_core and B >= 256):
        return B                                    # single grid step

    cands = [t for t in range(128, max_rows + 1, 128) if B % t == 0]
    if multi_core and cands:
        pref = [t for t in cands if (B // t) % 2 == 0 and (B // t) >= 4]
        if not pref:
            pref = [t for t in cands if (B // t) % 2 == 0]
        if pref:
            return max(pref)
    if cands:
        return max(cands)
    return B                                        # tiny / awkward B: one step


# ---------------------------------------------------------------------------
# Wrapper
# ---------------------------------------------------------------------------
def discriminator_forward(x, params, *, tile_b=None, matmul_dtype=jnp.bfloat16,
                          tanh_dtype=None):
    """x: (B, repr_dim) float32. Returns logits d of shape (B, 1) float32."""
    B, repr_dim = x.shape
    w1, b1, g, beta, w2, b2, w3, b3, w4, b4 = params
    feature_dim = w1.shape[1]
    hidden_dim = w2.shape[1]

    if tanh_dtype is None:
        tanh_dtype = _auto_tanh_dtype()
    matmul_itemsize = jnp.dtype(matmul_dtype).itemsize
    if tile_b is None:
        tile_b = _pick_tile_b(B, repr_dim, feature_dim, hidden_dim,
                              matmul_itemsize)
    assert tile_b == B or (B % tile_b == 0 and tile_b % 128 == 0), (
        "tile_b must equal B or be a 128-row divisor of B")
    num_tiles = B // tile_b

    # Weights for the MXU in bf16 (f32 accumulation inside the kernel).
    w1c = w1.astype(matmul_dtype)
    w2c = w2.astype(matmul_dtype)
    w3c = w3.astype(matmul_dtype)
    # Pack the per-feature / per-hidden constant rows into two blocks so the
    # pipeline issues 2 constant DMAs instead of 6 sublane-padded ones.
    cfeat = jnp.concatenate(
        [b1.reshape(1, feature_dim), g.reshape(1, feature_dim),
         beta.reshape(1, feature_dim)], axis=0).astype(jnp.float32)   # (3, F)
    chid = jnp.concatenate(
        [b2.reshape(1, hidden_dim), b3.reshape(1, hidden_dim),
         w4.reshape(1, hidden_dim)], axis=0).astype(jnp.float32)      # (3, H)
    b4_s = b4.reshape((1,)).astype(jnp.float32)                        # SMEM scalar

    def const_spec(shape):
        # Grid-invariant operand: single-buffer it (the block index never
        # changes, so double-buffering would only waste VMEM).
        return pl.BlockSpec(shape, lambda i: (0, 0),
                            pipeline_mode=pl.Buffered(1))

    in_specs = [
        pl.BlockSpec((tile_b, repr_dim), lambda i: (i, 0)),   # x (batch-tiled)
        const_spec((repr_dim, feature_dim)),                  # W1 (bf16)
        const_spec((3, feature_dim)),                         # [b1, gamma, beta]
        const_spec((feature_dim, hidden_dim)),                # W2 (bf16)
        const_spec((hidden_dim, hidden_dim)),                 # W3 (bf16)
        const_spec((3, hidden_dim)),                          # [b2, b3, w4_row]
        pl.BlockSpec(memory_space=pltpu.MemorySpace.SMEM),    # b4 scalar
    ]
    # Lane-dense output: (1, B) written as (1, tile_b) blocks (unmasked vst),
    # reshaped to (B, 1) in the wrapper.
    out_spec = pl.BlockSpec((1, tile_b), lambda i: (0, i))

    # Advisory cost estimate so XLA schedules surrounding ops sensibly.
    flops = 2 * B * (repr_dim * feature_dim + feature_dim * hidden_dim
                     + hidden_dim * hidden_dim + hidden_dim)
    transcendentals = B * (feature_dim + 1)            # tanh + rsqrt
    w_bytes = (w1c.size + w2c.size + w3c.size) * matmul_itemsize
    w_bytes += (cfeat.size + chid.size + b4_s.size) * 4
    bytes_accessed = int(x.size * x.dtype.itemsize + w_bytes + B * 4)
    cost = pl.CostEstimate(flops=int(flops),
                           transcendentals=int(transcendentals),
                           bytes_accessed=bytes_accessed)

    # Rough VMEM need: single-buffered weights + double-buffered x/out blocks
    # + live f32 intermediates.  Only raise the scoped limit when the default
    # is too small, and cap it at ~75% of this generation's VMEM capacity
    # (v7x has only 64 MiB per TensorCore).
    vmem_needed = (w_bytes
                   + 2 * tile_b * repr_dim * x.dtype.itemsize
                   + 2 * tile_b * 4
                   + 6 * tile_b * max(feature_dim, hidden_dim) * 4)
    cp_kwargs = dict(dimension_semantics=("parallel",))
    if vmem_needed > (16 << 20):
        vmem_cap = _tpu_vmem_capacity_bytes(_tpu_generation())
        cp_kwargs["vmem_limit_bytes"] = int(min(vmem_needed * 3 // 2,
                                                vmem_cap * 3 // 4))

    out = pl.pallas_call(
        functools.partial(_disc_kernel, tanh_dtype),
        out_shape=jax.ShapeDtypeStruct((1, B), jnp.float32),
        grid_spec=pltpu.PrefetchScalarGridSpec(
            num_scalar_prefetch=0,
            grid=(num_tiles,),
            in_specs=in_specs,
            out_specs=out_spec,
        ),
        compiler_params=pltpu.CompilerParams(**cp_kwargs),
        cost_estimate=cost,
    )(x, w1c, cfeat, w2c, w3c, chid, b4_s)
    return out.reshape(B, 1)


# ---------------------------------------------------------------------------
# Synthetic init + references
# ---------------------------------------------------------------------------
def init_params(key, repr_dim, feature_dim, input_net_dim, hidden_dim):
    """Deterministic synthetic init (scaled normal; nonzero biases/affine so
    every code path is exercised)."""
    assert input_net_dim == feature_dim, (
        "plain forward() requires input_net_dim == feature_dim")
    ks = jax.random.split(key, 10)

    def lin(kw, kb, fan_in, fan_out):
        w = jax.random.normal(kw, (fan_in, fan_out), jnp.float32) * (1.0 / jnp.sqrt(fan_in))
        b = jax.random.normal(kb, (1, fan_out), jnp.float32) * 0.1
        return w, b

    w1, b1 = lin(ks[0], ks[1], repr_dim, feature_dim)
    g = 1.0 + 0.1 * jax.random.normal(ks[2], (1, feature_dim), jnp.float32)   # LN weight
    beta = 0.1 * jax.random.normal(ks[3], (1, feature_dim), jnp.float32)      # LN bias
    w2, b2 = lin(ks[4], ks[5], input_net_dim, hidden_dim)
    w3, b3 = lin(ks[6], ks[7], hidden_dim, hidden_dim)
    w4, b4 = lin(ks[8], ks[9], hidden_dim, 1)
    return (w1, b1, g, beta, w2, b2, w3, b3, w4, b4)


def _reference_matched(x, params, matmul_dtype=jnp.bfloat16,
                       tanh_dtype=jnp.float32):
    """Mirrors the kernel math (bf16 matmul operands, f32 accumulation, f32 LN
    stats, tanh in tanh_dtype) for a tight correctness check."""
    w1, b1, g, beta, w2, b2, w3, b3, w4, b4 = params

    def dot(a, w):
        return jnp.dot(a.astype(matmul_dtype), w.astype(matmul_dtype),
                       preferred_element_type=jnp.float32)

    h = dot(x, w1) + b1
    mean = h.mean(-1, keepdims=True)
    hc = h - mean
    var = (hc * hc).mean(-1, keepdims=True)
    h = hc * jax.lax.rsqrt(var + LN_EPS) * g + beta
    h = jnp.tanh(h.astype(tanh_dtype)).astype(jnp.float32)
    h = jnp.maximum(dot(h, w2) + b2, 0.0)
    h = jnp.maximum(dot(h, w3) + b3, 0.0)
    return h @ w4 + b4


def _reference_f32(x, params):
    """Pure-f32 reference matching the PyTorch module semantics."""
    w1, b1, g, beta, w2, b2, w3, b3, w4, b4 = params
    h = x @ w1 + b1
    mean = h.mean(-1, keepdims=True)
    var = ((h - mean) ** 2).mean(-1, keepdims=True)
    h = jnp.tanh((h - mean) / jnp.sqrt(var + LN_EPS) * g + beta)
    h = jnp.maximum(h @ w2 + b2, 0.0)
    h = jnp.maximum(h @ w3 + b3, 0.0)
    return h @ w4 + b4


if __name__ == "__main__":
    # Small, TPU-friendly shapes: feature axes are a multiple of the 128-lane
    # width; batch is big enough to exercise the batch-tiled grid on v7x while
    # still fitting a single grid step on single-core v5e/v6e.
    B, repr_dim, feature_dim, hidden_dim = 512, 128, 128, 128
    input_net_dim = feature_dim

    key = jax.random.PRNGKey(0)
    kx, kp = jax.random.split(key)
    x = jax.random.normal(kx, (B, repr_dim), jnp.float32)
    params = init_params(kp, repr_dim, feature_dim, input_net_dim, hidden_dim)

    # TODO(synk): spectral_norm_bool=True (power-iteration weight normalization)
    # and the dist='binary' Bernoulli wrapper are not implemented; the kernel
    # returns raw logits d, matching the dist=None path.
    td = _auto_tanh_dtype()
    d = discriminator_forward(x, params, tanh_dtype=td)
    d = jax.block_until_ready(d)
    assert d.shape == (B, 1)

    ref = _reference_matched(x, params, tanh_dtype=td)   # same precision recipe
    assert jnp.allclose(d, ref, atol=2e-3, rtol=2e-3), float(jnp.max(jnp.abs(d - ref)))

    ref32 = _reference_f32(x, params)                    # full-f32 module semantics
    assert jnp.allclose(d, ref32, atol=2e-1, rtol=2e-1), float(jnp.max(jnp.abs(d - ref32)))

    print("KERNEL_OK")
</pallas_src>

<mosaic_0001>
module attributes {stable_mosaic.version = 11 : i64} {
  func.func @_disc_kernel(%arg0: i32, %arg1: memref<512x128xf32, #tpu.memory_space<vmem>>, %arg2: memref<128x128xbf16, #tpu.memory_space<vmem>>, %arg3: memref<3x128xf32, #tpu.memory_space<vmem>>, %arg4: memref<128x128xbf16, #tpu.memory_space<vmem>>, %arg5: memref<128x128xbf16, #tpu.memory_space<vmem>>, %arg6: memref<3x128xf32, #tpu.memory_space<vmem>>, %arg7: memref<1xf32, #tpu.memory_space<smem>>, %arg8: memref<1x512xf32, #tpu.memory_space<vmem>>) attributes {dimension_semantics = [#tpu.dimension_semantics<parallel>], iteration_bounds = array<i64: 1>, scalar_prefetch = 0 : i64, scratch_operands = 0 : i64, tpu.core_type = #tpu.core_type<tc>, window_params = [{transform_indices = @transform_0, window_bounds = array<i64: 512, 128>}, {pipeline_mode = #tpu.pipeline_mode<synchronous>, transform_indices = @transform_1, window_bounds = array<i64: 128, 128>}, {pipeline_mode = #tpu.pipeline_mode<synchronous>, transform_indices = @transform_2, window_bounds = array<i64: 3, 128>}, {pipeline_mode = #tpu.pipeline_mode<synchronous>, transform_indices = @transform_3, window_bounds = array<i64: 128, 128>}, {pipeline_mode = #tpu.pipeline_mode<synchronous>, transform_indices = @transform_4, window_bounds = array<i64: 128, 128>}, {pipeline_mode = #tpu.pipeline_mode<synchronous>, transform_indices = @transform_5, window_bounds = array<i64: 3, 128>}, {transform_indices = @transform_6, window_bounds = array<i64: 1>}, {transform_indices = @transform_7, window_bounds = array<i64: 1, 512>}]} {
    %c0 = arith.constant 0 : index
    %c0_0 = arith.constant 0 : index
    %0 = vector.load %arg3[%c0, %c0_0] : memref<3x128xf32, #tpu.memory_space<vmem>>, vector<1x128xf32>
    %c1 = arith.constant 1 : index
    %c0_1 = arith.constant 0 : index
    %1 = vector.load %arg3[%c1, %c0_1] : memref<3x128xf32, #tpu.memory_space<vmem>>, vector<1x128xf32>
    %c2 = arith.constant 2 : index
    %c0_2 = arith.constant 0 : index
    %2 = vector.load %arg3[%c2, %c0_2] : memref<3x128xf32, #tpu.memory_space<vmem>>, vector<1x128xf32>
    %c0_3 = arith.constant 0 : index
    %c0_4 = arith.constant 0 : index
    %3 = vector.load %arg6[%c0_3, %c0_4] : memref<3x128xf32, #tpu.memory_space<vmem>>, vector<1x128xf32>
    %c1_5 = arith.constant 1 : index
    %c0_6 = arith.constant 0 : index
    %4 = vector.load %arg6[%c1_5, %c0_6] : memref<3x128xf32, #tpu.memory_space<vmem>>, vector<1x128xf32>
    %c2_7 = arith.constant 2 : index
    %c0_8 = arith.constant 0 : index
    %5 = vector.load %arg6[%c2_7, %c0_8] : memref<3x128xf32, #tpu.memory_space<vmem>>, vector<1x128xf32>
    %c0_9 = arith.constant 0 : index
    %c0_10 = arith.constant 0 : index
    %6 = vector.load %arg1[%c0_9, %c0_10] : memref<512x128xf32, #tpu.memory_space<vmem>>, vector<512x128xf32>
    %7 = arith.truncf %6 : vector<512x128xf32> to vector<512x128xbf16>
    %c0_11 = arith.constant 0 : index
    %c0_12 = arith.constant 0 : index
    %8 = vector.load %arg2[%c0_11, %c0_12] : memref<128x128xbf16, #tpu.memory_space<vmem>>, vector<128x128xbf16>
    %cst = arith.constant dense<0.000000e+00> : vector<512x128xf32>
    %9 = tpu.matmul %7, %8, %cst {dimension_numbers = #tpu.dot_dimension_numbers<[1], [0], [0], [1], [0, 0, 1, 1], [], []>} : vector<512x128xbf16>, vector<128x128xbf16>, vector<512x128xf32> -> vector<512x128xf32>
    %10 = vector.broadcast %0 : vector<1x128xf32> to vector<512x128xf32>
    %11 = arith.addf %9, %10 : vector<512x128xf32>
    %cst_13 = arith.constant dense<0.000000e+00> : vector<512xf32>
    %12 = vector.multi_reduction <add>, %11, %cst_13 [1] : vector<512x128xf32> to vector<512xf32>
    %13 = vector.shape_cast %12 : vector<512xf32> to vector<512x1xf32>
    %cst_14 = arith.constant 1.280000e+02 : f32
    %14 = vector.broadcast %cst_14 : f32 to vector<512x1xf32>
    %15 = arith.divf %13, %14 : vector<512x1xf32>
    %16 = vector.broadcast %15 : vector<512x1xf32> to vector<512x128xf32>
    %17 = arith.subf %11, %16 : vector<512x128xf32>
    %18 = arith.mulf %17, %17 : vector<512x128xf32>
    %cst_15 = arith.constant dense<0.000000e+00> : vector<512xf32>
    %19 = vector.multi_reduction <add>, %18, %cst_15 [1] : vector<512x128xf32> to vector<512xf32>
    %20 = vector.shape_cast %19 : vector<512xf32> to vector<512x1xf32>
    %cst_16 = arith.constant 1.280000e+02 : f32
    %21 = vector.broadcast %cst_16 : f32 to vector<512x1xf32>
    %22 = arith.divf %20, %21 : vector<512x1xf32>
    %cst_17 = arith.constant 9.99999974E-6 : f32
    %23 = vector.broadcast %cst_17 : f32 to vector<512x1xf32>
    %24 = arith.addf %22, %23 : vector<512x1xf32>
    %25 = math.rsqrt %24 : vector<512x1xf32>
    %26 = vector.broadcast %25 : vector<512x1xf32> to vector<512x128xf32>
    %27 = arith.mulf %17, %26 : vector<512x128xf32>
    %28 = vector.broadcast %1 : vector<1x128xf32> to vector<512x128xf32>
    %29 = arith.mulf %27, %28 : vector<512x128xf32>
    %30 = vector.broadcast %2 : vector<1x128xf32> to vector<512x128xf32>
    %31 = arith.addf %29, %30 : vector<512x128xf32>
    %32 = math.tanh %31 : vector<512x128xf32>
    %33 = arith.truncf %32 : vector<512x128xf32> to vector<512x128xbf16>
    %c0_18 = arith.constant 0 : index
    %c0_19 = arith.constant 0 : index
    %34 = vector.load %arg4[%c0_18, %c0_19] : memref<128x128xbf16, #tpu.memory_space<vmem>>, vector<128x128xbf16>
    %cst_20 = arith.constant dense<0.000000e+00> : vector<512x128xf32>
    %35 = tpu.matmul %33, %34, %cst_20 {dimension_numbers = #tpu.dot_dimension_numbers<[1], [0], [0], [1], [0, 0, 1, 1], [], []>} : vector<512x128xbf16>, vector<128x128xbf16>, vector<512x128xf32> -> vector<512x128xf32>
    %36 = vector.broadcast %3 : vector<1x128xf32> to vector<512x128xf32>
    %37 = arith.addf %35, %36 : vector<512x128xf32>
    %cst_21 = arith.constant 0.000000e+00 : f32
    %38 = vector.broadcast %cst_21 : f32 to vector<512x128xf32>
    %39 = arith.maximumf %37, %38 : vector<512x128xf32>
    %40 = arith.truncf %39 : vector<512x128xf32> to vector<512x128xbf16>
    %c0_22 = arith.constant 0 : index
    %c0_23 = arith.constant 0 : index
    %41 = vector.load %arg5[%c0_22, %c0_23] : memref<128x128xbf16, #tpu.memory_space<vmem>>, vector<128x128xbf16>
    %cst_24 = arith.constant dense<0.000000e+00> : vector<512x128xf32>
    %42 = tpu.matmul %40, %41, %cst_24 {dimension_numbers = #tpu.dot_dimension_numbers<[1], [0], [0], [1], [0, 0, 1, 1], [], []>} : vector<512x128xbf16>, vector<128x128xbf16>, vector<512x128xf32> -> vector<512x128xf32>
    %43 = vector.broadcast %4 : vector<1x128xf32> to vector<512x128xf32>
    %44 = arith.addf %42, %43 : vector<512x128xf32>
    %cst_25 = arith.constant 0.000000e+00 : f32
    %45 = vector.broadcast %cst_25 : f32 to vector<512x128xf32>
    %46 = arith.maximumf %44, %45 : vector<512x128xf32>
    %cst_26 = arith.constant dense<0.000000e+00> : vector<1x512xf32>
    %47 = tpu.matmul %5, %46, %cst_26 {dimension_numbers = #tpu.dot_dimension_numbers<[1], [1], [0], [0], [0, 0, 1, 0], [], []>} : vector<1x128xf32>, vector<512x128xf32>, vector<1x512xf32> -> vector<1x512xf32>
    %c0_27 = arith.constant 0 : index
    %48 = memref.load %arg7[%c0_27] : memref<1xf32, #tpu.memory_space<smem>>
    %49 = vector.broadcast %48 : f32 to vector<1x512xf32>
    %50 = arith.addf %47, %49 : vector<1x512xf32>
    %c0_28 = arith.constant 0 : index
    %c0_29 = arith.constant 0 : index
    %51 = vector.load %arg8[%c0_28, %c0_29] : memref<1x512xf32, #tpu.memory_space<vmem>>, vector<1x512xf32>
    tpu.vector_store %arg8[%c0_28, %c0_29], %50 {strides = array<i32>} : memref<1x512xf32, #tpu.memory_space<vmem>>, vector<1x512xf32>,
    return
  }
  func.func @transform_0(%arg0: i32) -> (i32, i32) {
    %c0_i32 = arith.constant 0 : i32
    %c0_i32_0 = arith.constant 0 : i32
    return %arg0, %c0_i32 : i32, i32
  }
  func.func @transform_1(%arg0: i32) -> (i32, i32) {
    %c0_i32 = arith.constant 0 : i32
    %c0_i32_0 = arith.constant 0 : i32
    %c0_i32_1 = arith.constant 0 : i32
    return %c0_i32, %c0_i32_0 : i32, i32
  }
  func.func @transform_2(%arg0: i32) -> (i32, i32) {
    %c0_i32 = arith.constant 0 : i32
    %c0_i32_0 = arith.constant 0 : i32
    %c0_i32_1 = arith.constant 0 : i32
    return %c0_i32, %c0_i32_0 : i32, i32
  }
  func.func @transform_3(%arg0: i32) -> (i32, i32) {
    %c0_i32 = arith.constant 0 : i32
    %c0_i32_0 = arith.constant 0 : i32
    %c0_i32_1 = arith.constant 0 : i32
    return %c0_i32, %c0_i32_0 : i32, i32
  }
  func.func @transform_4(%arg0: i32) -> (i32, i32) {
    %c0_i32 = arith.constant 0 : i32
    %c0_i32_0 = arith.constant 0 : i32
    %c0_i32_1 = arith.constant 0 : i32
    return %c0_i32, %c0_i32_0 : i32, i32
  }
  func.func @transform_5(%arg0: i32) -> (i32, i32) {
    %c0_i32 = arith.constant 0 : i32
    %c0_i32_0 = arith.constant 0 : i32
    %c0_i32_1 = arith.constant 0 : i32
    return %c0_i32, %c0_i32_0 : i32, i32
  }
  func.func @transform_6(%arg0: i32) -> i32 {
    %c0_i32 = arith.constant 0 : i32
    %c0_i32_0 = arith.constant 0 : i32
    return %c0_i32 : i32
  }
  func.func @transform_7(%arg0: i32) -> (i32, i32) {
    %c0_i32 = arith.constant 0 : i32
    %c0_i32_0 = arith.constant 0 : i32
    return %c0_i32, %arg0 : i32, i32
  }
}

</mosaic_0001>

<llo_original>
// kernel: tpu_custom_call.1
$region0: #{tpu_custom_call.1}
  #allocation0 [shape = 'u32[]', space=smem, size = 0x4, offset = 0x4, fixed_abs, tag = 'smem constant byte address 0x4 - core index']
  #allocation1 [shape = 'u32[72,128]{1,0:T(1,128)}', space=vmem, size = 0x9000, scoped, tag = 'internal scratch']
  #allocation2 [shape = 'f32[1]{0:T(128)S(6)}', space=smem, size = 0x200, scoped, tag = 'scoped memory for tpu_custom_call.1']
  %s0 = inlined_call_operand.hbm [shape: f32[512,128], index: 0, kind: input, shape index: {}]
  %s1 = inlined_call_operand.hbm [shape: bf16[128,128], index: 1, kind: input, shape index: {}]
  %s2 = inlined_call_operand.hbm [shape: f32[3,128], index: 2, kind: input, shape index: {}]
  %s3 = inlined_call_operand.hbm [shape: bf16[128,128], index: 3, kind: input, shape index: {}]
  %s4 = inlined_call_operand.hbm [shape: bf16[128,128], index: 4, kind: input, shape index: {}]
  %s5 = inlined_call_operand.vmem [shape: f32[3,128], index: 5, kind: input, shape index: {}]
  %s6 = inlined_call_operand.<no memory space> [shape: f32[1], index: 6, kind: input, shape index: {}]
  %s7 = inlined_call_operand.hbm [shape: f32[1,512], index: 7, kind: output, shape index: {}]
  %s8 = sld [smem:[#allocation0]]
  $region58: #{tpu_custom_call.1} parent=0
    _
  %s10 = ssub.s32 1, %s8
  %s11 = scalar_select 0, %s10, %s8
  %12 = sst [smem:[#allocation2]] %s6
  $region1: #{tpu_custom_call.1} parent=0
    #allocation3 [shape = 'u8[262144]{0}', space=vmem, size = 0x40000, scoped, tag = 'input window, operand 0, single buffered']
    #allocation4 [shape = 's32[1]{0}', space=sflag, size = 0x4, scoped, tag = 'scoped memory for tpu_custom_call.1']
    #allocation5 [shape = 's32[1]{0}', space=sflag, size = 0x4, scoped, tag = 'scoped memory for tpu_custom_call.1']
    #allocation6 [shape = 'u8[32768]{0}', space=vmem, size = 0x8000, scoped, tag = 'input window, operand 1, single buffered']
    #allocation7 [shape = 's32[1]{0}', space=sflag, size = 0x4, scoped, tag = 'scoped memory for tpu_custom_call.1']
    #allocation8 [shape = 'u8[2048]{0}', space=vmem, size = 0x800, scoped, tag = 'input window, operand 2, single buffered']
    #allocation9 [shape = 'u8[32768]{0}', space=vmem, size = 0x8000, scoped, tag = 'input window, operand 3, single buffered']
    #allocation10 [shape = 's32[1]{0}', space=sflag, size = 0x4, scoped, tag = 'scoped memory for tpu_custom_call.1']
    #allocation11 [shape = 'u8[32768]{0}', space=vmem, size = 0x8000, scoped, tag = 'input window, operand 4, single buffered']
    #allocation12 [shape = 'u8[2048]{0}', space=vmem, size = 0x800, scoped, tag = 'output window, operand 0, single buffered']
    %13 = vsyncpa [#allocation4], 0
    %14 = vsyncpa [#allocation7], 0
    %15 = vsyncpa [#allocation10], 0
    %16 = vsyncpa [#allocation5], 0
    // Predicated region
    $region2: #{tpu_custom_call.1} parent=1 // pred_check
      _
    $region3: #{tpu_custom_call.1} parent=1 // pred_check_branch
      %18 = sbr.rel (0) target = $region5
    $region4: #{tpu_custom_call.1} parent=1 // pred_region
      %20 = vsyncadd [#allocation4], 0
      %s21 = sshll.u32 %s0, 4
      %s22 = int_to_ptr.hbm [resolvable:$true] %s21
      %s23 = sshll.u32 [#allocation3], 4
      %s24 = int_to_ptr.vmem [resolvable:$true] %s23
      %29 = dma.hbm_to_vmem [thread:$0]  %s22, 8192, %s24, [#allocation4], 128, 128, 8
    $region5: #{tpu_custom_call.1} parent=1 // pred_fallthru
      _
    // Predicated region
    $region6: #{tpu_custom_call.1} parent=1 // pred_check
      _
    $region7: #{tpu_custom_call.1} parent=1 // pred_check_branch
      %31 = sbr.rel (0) target = $region9
    $region8: #{tpu_custom_call.1} parent=1 // pred_region
      %33 = vsyncadd [#allocation7], 0
      %s34 = sshll.u32 %s1, 4
      %s35 = int_to_ptr.hbm [resolvable:$true] %s34
      %s36 = sshll.u32 [#allocation6], 4
      %s37 = int_to_ptr.vmem [resolvable:$true] %s36
      %42 = dma.hbm_to_vmem [thread:$0]  %s35, 1024, %s37, [#allocation7], 64, 64, 4
    $region9: #{tpu_custom_call.1} parent=1 // pred_fallthru
      _
    // Predicated region
    $region10: #{tpu_custom_call.1} parent=1 // pred_check
      _
    $region11: #{tpu_custom_call.1} parent=1 // pred_check_branch
      %44 = sbr.rel (0) target = $region13
    $region12: #{tpu_custom_call.1} parent=1 // pred_region
      %46 = vsyncadd [#allocation7], 0
      %s48 = sshll.u32 %s2, 4
      %s49 = int_to_ptr.hbm [resolvable:$true] %s48
      %s50 = sshll.u32 [#allocation8], 4
      %s51 = int_to_ptr.vmem [resolvable:$true] %s50
      %53 = dma.hbm_to_vmem [thread:$0]  %s49, 64, %s51, [#allocation7]
    $region13: #{tpu_custom_call.1} parent=1 // pred_fallthru
      _
    // Predicated region
    $region14: #{tpu_custom_call.1} parent=1 // pred_check
      _
    $region15: #{tpu_custom_call.1} parent=1 // pred_check_branch
      %55 = sbr.rel (0) target = $region17
    $region16: #{tpu_custom_call.1} parent=1 // pred_region
      %57 = vsyncadd [#allocation10], 0
      %s58 = sshll.u32 %s3, 4
      %s59 = int_to_ptr.hbm [resolvable:$true] %s58
      %s60 = sshll.u32 [#allocation9], 4
      %s61 = int_to_ptr.vmem [resolvable:$true] %s60
      %66 = dma.hbm_to_vmem [thread:$0]  %s59, 1024, %s61, [#allocation10], 64, 64, 4
    $region17: #{tpu_custom_call.1} parent=1 // pred_fallthru
      _
    // Predicated region
    $region18: #{tpu_custom_call.1} parent=1 // pred_check
      _
    $region19: #{tpu_custom_call.1} parent=1 // pred_check_branch
      %68 = sbr.rel (0) target = $region21
    $region20: #{tpu_custom_call.1} parent=1 // pred_region
      %70 = vsyncadd [#allocation10], 0
      %s71 = sshll.u32 %s4, 4
      %s72 = int_to_ptr.hbm [resolvable:$true] %s71
      %s73 = sshll.u32 [#allocation11], 4
      %s74 = int_to_ptr.vmem [resolvable:$true] %s73
      %79 = dma.hbm_to_vmem [thread:$0]  %s72, 1024, %s74, [#allocation10], 64, 64, 4
    $region21: #{tpu_custom_call.1} parent=1 // pred_fallthru
      _
    // Predicated region
    $region22: #{tpu_custom_call.1} parent=1 // pred_check
      _
    $region23: #{tpu_custom_call.1} parent=1 // pred_check_branch
      %81 = sbr.rel (0) target = $region25
    $region24: #{tpu_custom_call.1} parent=1 // pred_region
      _
    $region25: #{tpu_custom_call.1} parent=1 // pred_fallthru
      _
    // Predicated region
    $region26: #{tpu_custom_call.1} parent=1 // pred_check
      _
    $region27: #{tpu_custom_call.1} parent=1 // pred_check_branch
      %83 = sbr.rel (0) target = $region29
    $region28: #{tpu_custom_call.1} parent=1 // pred_region
      _
    $region29: #{tpu_custom_call.1} parent=1 // pred_fallthru
      _
    // Predicated region
    $region30: #{tpu_custom_call.1} parent=1 // pred_check
      _
    $region31: #{tpu_custom_call.1} parent=1 // pred_check_branch
      %85 = sbr.rel (0) target = $region33
    $region32: #{tpu_custom_call.1} parent=1 // pred_region
      %87 = dma.done [#allocation4], 8192
    $region33: #{tpu_custom_call.1} parent=1 // pred_fallthru
      _
    // Predicated region
    $region34: #{tpu_custom_call.1} parent=1 // pred_check
      _
    $region35: #{tpu_custom_call.1} parent=1 // pred_check_branch
      %89 = sbr.rel (0) target = $region37
    $region36: #{tpu_custom_call.1} parent=1 // pred_region
      %91 = dma.done [#allocation7], 1024
    $region37: #{tpu_custom_call.1} parent=1 // pred_fallthru
      _
    // Predicated region
    $region38: #{tpu_custom_call.1} parent=1 // pred_check
      _
    $region39: #{tpu_custom_call.1} parent=1 // pred_check_branch
      %93 = sbr.rel (0) target = $region41
    $region40: #{tpu_custom_call.1} parent=1 // pred_region
      %95 = dma.done [#allocation7], 64
    $region41: #{tpu_custom_call.1} parent=1 // pred_fallthru
      _
    // Predicated region
    $region42: #{tpu_custom_call.1} parent=1 // pred_check
      _
    $region43: #{tpu_custom_call.1} parent=1 // pred_check_branch
      %97 = sbr.rel (0) target = $region45
    $region44: #{tpu_custom_call.1} parent=1 // pred_region
      %99 = dma.done [#allocation10], 1024
    $region45: #{tpu_custom_call.1} parent=1 // pred_fallthru
      _
    // Predicated region
    $region46: #{tpu_custom_call.1} parent=1 // pred_check
      _
    $region47: #{tpu_custom_call.1} parent=1 // pred_check_branch
      %101 = sbr.rel (0) target = $region49
    $region48: #{tpu_custom_call.1} parent=1 // pred_region
      %103 = dma.done [#allocation10], 1024
    $region49: #{tpu_custom_call.1} parent=1 // pred_fallthru
      _
    %v104 = vld [vmem:[#allocation8] sm:$0x1]
    %v105 = vld [vmem:[#allocation8 + $0x1] sm:$0x1]
    %v106 = vld [vmem:[#allocation8 + $0x2] sm:$0x1]
    %v107 = vld [vmem:[%s5] sm:$0x1]
    %v108 = vld [vmem:[%s5 + $0x1] sm:$0x1]
    %v109 = vld [vmem:[%s5 + $0x2] sm:$0x1]
    %v110 = vld [vmem:[#allocation3] sm:$0xff]
    %v111 = vld [vmem:[#allocation3 + $0x8] sm:$0xff]
    %v112 = vld [vmem:[#allocation3 + $0x10] sm:$0xff]
    %v113 = vld [vmem:[#allocation3 + $0x18] sm:$0xff]
    %v114 = vld [vmem:[#allocation3 + $0x20] sm:$0xff]
    %v115 = vld [vmem:[#allocation3 + $0x28] sm:$0xff]
    %v116 = vld [vmem:[#allocation3 + $0x30] sm:$0xff]
    %v117 = vld [vmem:[#allocation3 + $0x38] sm:$0xff]
    %v118 = vld [vmem:[#allocation3 + $0x40] sm:$0xff]
    %v119 = vld [vmem:[#allocation3 + $0x48] sm:$0xff]
    %v120 = vld [vmem:[#allocation3 + $0x50] sm:$0xff]
    %v121 = vld [vmem:[#allocation3 + $0x58] sm:$0xff]
    %v122 = vld [vmem:[#allocation3 + $0x60] sm:$0xff]
    %v123 = vld [vmem:[#allocation3 + $0x68] sm:$0xff]
    %v124 = vld [vmem:[#allocation3 + $0x70] sm:$0xff]
    %v125 = vld [vmem:[#allocation3 + $0x78] sm:$0xff]
    %v126 = vld [vmem:[#allocation3 + $0x80] sm:$0xff]
    %v127 = vld [vmem:[#allocation3 + $0x88] sm:$0xff]
    %v128 = vld [vmem:[#allocation3 + $0x90] sm:$0xff]
    %v129 = vld [vmem:[#allocation3 + $0x98] sm:$0xff]
    %v130 = vld [vmem:[#allocation3 + $0xa0] sm:$0xff]
    %v131 = vld [vmem:[#allocation3 + $0xa8] sm:$0xff]
    %v132 = vld [vmem:[#allocation3 + $0xb0] sm:$0xff]
    %v133 = vld [vmem:[#allocation3 + $0xb8] sm:$0xff]
    %v134 = vld [vmem:[#allocation3 + $0xc0] sm:$0xff]
    %v135 = vld [vmem:[#allocation3 + $0xc8] sm:$0xff]
    %v136 = vld [vmem:[#allocation3 + $0xd0] sm:$0xff]
    %v137 = vld [vmem:[#allocation3 + $0xd8] sm:$0xff]
    %v138 = vld [vmem:[#allocation3 + $0xe0] sm:$0xff]
    %v139 = vld [vmem:[#allocation3 + $0xe8] sm:$0xff]
    %v140 = vld [vmem:[#allocation3 + $0xf0] sm:$0xff]
    %v141 = vld [vmem:[#allocation3 + $0xf8] sm:$0xff]
    %v142 = vld [vmem:[#allocation3 + $0x100] sm:$0xff]
    %v143 = vld [vmem:[#allocation3 + $0x108] sm:$0xff]
    %v144 = vld [vmem:[#allocation3 + $0x110] sm:$0xff]
    %v145 = vld [vmem:[#allocation3 + $0x118] sm:$0xff]
    %v146 = vld [vmem:[#allocation3 + $0x120] sm:$0xff]
    %v147 = vld [vmem:[#allocation3 + $0x128] sm:$0xff]
    %v148 = vld [vmem:[#allocation3 + $0x130] sm:$0xff]
    %v149 = vld [vmem:[#allocation3 + $0x138] sm:$0xff]
    %v150 = vld [vmem:[#allocation3 + $0x140] sm:$0xff]
    %v151 = vld [vmem:[#allocation3 + $0x148] sm:$0xff]
    %v152 = vld [vmem:[#allocation3 + $0x150] sm:$0xff]
    %v153 = vld [vmem:[#allocation3 + $0x158] sm:$0xff]
    %v154 = vld [vmem:[#allocation3 + $0x160] sm:$0xff]
    %v155 = vld [vmem:[#allocation3 + $0x168] sm:$0xff]
    %v156 = vld [vmem:[#allocation3 + $0x170] sm:$0xff]
    %v157 = vld [vmem:[#allocation3 + $0x178] sm:$0xff]
    %v158 = vld [vmem:[#allocation3 + $0x180] sm:$0xff]
    %v159 = vld [vmem:[#allocation3 + $0x188] sm:$0xff]
    %v160 = vld [vmem:[#allocation3 + $0x190] sm:$0xff]
    %v161 = vld [vmem:[#allocation3 + $0x198] sm:$0xff]
    %v162 = vld [vmem:[#allocation3 + $0x1a0] sm:$0xff]
    %v163 = vld [vmem:[#allocation3 + $0x1a8] sm:$0xff]
    %v164 = vld [vmem:[#allocation3 + $0x1b0] sm:$0xff]
    %v165 = vld [vmem:[#allocation3 + $0x1b8] sm:$0xff]
    %v166 = vld [vmem:[#allocation3 + $0x1c0] sm:$0xff]
    %v167 = vld [vmem:[#allocation3 + $0x1c8] sm:$0xff]
    %v168 = vld [vmem:[#allocation3 + $0x1d0] sm:$0xff]
    %v169 = vld [vmem:[#allocation3 + $0x1d8] sm:$0xff]
    %v170 = vld [vmem:[#allocation3 + $0x1e0] sm:$0xff]
    %v171 = vld [vmem:[#allocation3 + $0x1e8] sm:$0xff]
    %v172 = vld [vmem:[#allocation3 + $0x1f0] sm:$0xff]
    %v173 = vld [vmem:[#allocation3 + $0x1f8] sm:$0xff]
    %v174 = vpack.c.bf16 %v111, %v110
    %v175 = vpack.c.bf16 %v113, %v112
    %v176 = vpack.c.bf16 %v115, %v114
    %v177 = vpack.c.bf16 %v117, %v116
    %v178 = vpack.c.bf16 %v119, %v118
    %v179 = vpack.c.bf16 %v121, %v120
    %v180 = vpack.c.bf16 %v123, %v122
    %v181 = vpack.c.bf16 %v125, %v124
    %v182 = vpack.c.bf16 %v127, %v126
    %v183 = vpack.c.bf16 %v129, %v128
    %v184 = vpack.c.bf16 %v131, %v130
    %v185 = vpack.c.bf16 %v133, %v132
    %v186 = vpack.c.bf16 %v135, %v134
    %v187 = vpack.c.bf16 %v137, %v136
    %v188 = vpack.c.bf16 %v139, %v138
    %v189 = vpack.c.bf16 %v141, %v140
    %v190 = vpack.c.bf16 %v143, %v142
    %v191 = vpack.c.bf16 %v145, %v144
    %v192 = vpack.c.bf16 %v147, %v146
    %v193 = vpack.c.bf16 %v149, %v148
    %v194 = vpack.c.bf16 %v151, %v150
    %v195 = vpack.c.bf16 %v153, %v152
    %v196 = vpack.c.bf16 %v155, %v154
    %v197 = vpack.c.bf16 %v157, %v156
    %v198 = vpack.c.bf16 %v159, %v158
    %v199 = vpack.c.bf16 %v161, %v160
    %v200 = vpack.c.bf16 %v163, %v162
    %v201 = vpack.c.bf16 %v165, %v164
    %v202 = vpack.c.bf16 %v167, %v166
    %v203 = vpack.c.bf16 %v169, %v168
    %v204 = vpack.c.bf16 %v171, %v170
    %v205 = vpack.c.bf16 %v173, %v172
    %v206 = vld [vmem:[#allocation6] sm:$0xf]
    %v207 = vld [vmem:[#allocation6 + $0x4] sm:$0xf]
    %v208 = vld [vmem:[#allocation6 + $0x8] sm:$0xf]
    %v209 = vld [vmem:[#allocation6 + $0xc] sm:$0xf]
    %v210 = vld [vmem:[#allocation6 + $0x10] sm:$0xf]
    %v211 = vld [vmem:[#allocation6 + $0x14] sm:$0xf]
    %v212 = vld [vmem:[#allocation6 + $0x18] sm:$0xf]
    %v213 = vld [vmem:[#allocation6 + $0x1c] sm:$0xf]
    %v214 = vld [vmem:[#allocation6 + $0x20] sm:$0xf]
    %v215 = vld [vmem:[#allocation6 + $0x24] sm:$0xf]
    %v216 = vld [vmem:[#allocation6 + $0x28] sm:$0xf]
    %v217 = vld [vmem:[#allocation6 + $0x2c] sm:$0xf]
    %v218 = vld [vmem:[#allocation6 + $0x30] sm:$0xf]
    %v219 = vld [vmem:[#allocation6 + $0x34] sm:$0xf]
    %v220 = vld [vmem:[#allocation6 + $0x38] sm:$0xf]
    %v221 = vld [vmem:[#allocation6 + $0x3c] sm:$0xf]
    %v222 = vperm.slane %v104, 0
    %v239 = vunpack.c.l.b16 %v206
    %v240 = vunpack.c.l.b16 %v207
    %v241 = vunpack.c.l.b16 %v208
    %v242 = vunpack.c.l.b16 %v209
    %v243 = vunpack.c.l.b16 %v210
    %v244 = vunpack.c.l.b16 %v211
    %v245 = vunpack.c.l.b16 %v212
    %v246 = vunpack.c.l.b16 %v213
    %v247 = vunpack.c.l.b16 %v214
    %v248 = vunpack.c.l.b16 %v215
    %v249 = vunpack.c.l.b16 %v216
    %v250 = vunpack.c.l.b16 %v217
    %v251 = vunpack.c.l.b16 %v218
    %v252 = vunpack.c.l.b16 %v219
    %v253 = vunpack.c.l.b16 %v220
    %v254 = vunpack.c.l.b16 %v221
    %v255 = vpack.c.b16 %v240, %v239
    %v256 = vpack.c.b16 %v242, %v241
    %v257 = vpack.c.b16 %v244, %v243
    %v258 = vpack.c.b16 %v246, %v245
    %v259 = vpack.c.b16 %v248, %v247
    %v260 = vpack.c.b16 %v250, %v249
    %v261 = vpack.c.b16 %v252, %v251
    %v262 = vpack.c.b16 %v254, %v253
    %271 = vmatpush.bf16.msra.mxu0 %v262
    %272 = vmatpush.bf16.msra.mxu0 %v261
    %273 = vmatpush.bf16.msra.mxu0 %v260
    %274 = vmatpush.bf16.msra.mxu0 %v259
    %275 = vmatpush.bf16.msra.mxu0 %v258
    %276 = vmatpush.bf16.msra.mxu0 %v257
    %277 = vmatpush.bf16.msra.mxu0 %v256
    %278 = vmatpush.bf16.msra.mxu0 %v255
    %279 = vmatmul.bf16.gmra.mxu0 %v174
    %v280 = vpop.f32.mrf.mxu0
    %v281 = vadd.f32 %v222, %v280
    %v282 = vpop.f32.mrf.mxu0
    %v283 = vadd.f32 %v222, %v282
    %284 = vmatmul.bf16.gmra.mxu0 %v175
    %v285 = vpop.f32.mrf.mxu0
    %v286 = vadd.f32 %v222, %v285
    %v287 = vpop.f32.mrf.mxu0
    %v288 = vadd.f32 %v222, %v287
    %289 = vmatmul.bf16.gmra.mxu0 %v176
    %v290 = vpop.f32.mrf.mxu0
    %v291 = vadd.f32 %v222, %v290
    %v292 = vpop.f32.mrf.mxu0
    %v293 = vadd.f32 %v222, %v292
    %294 = vmatmul.bf16.gmra.mxu0 %v177
    %v295 = vpop.f32.mrf.mxu0
    %v296 = vadd.f32 %v222, %v295
    %v297 = vpop.f32.mrf.mxu0
    %v298 = vadd.f32 %v222, %v297
    %299 = vmatmul.bf16.gmra.mxu0 %v178
    %v300 = vpop.f32.mrf.mxu0
    %v301 = vadd.f32 %v222, %v300
    %v302 = vpop.f32.mrf.mxu0
    %v303 = vadd.f32 %v222, %v302
    %304 = vmatmul.bf16.gmra.mxu0 %v179
    %v305 = vpop.f32.mrf.mxu0
    %v306 = vadd.f32 %v222, %v305
    %v307 = vpop.f32.mrf.mxu0
    %v308 = vadd.f32 %v222, %v307
    %309 = vmatmul.bf16.gmra.mxu0 %v180
    %v310 = vpop.f32.mrf.mxu0
    %v311 = vadd.f32 %v222, %v310
    %v312 = vpop.f32.mrf.mxu0
    %v313 = vadd.f32 %v222, %v312
    %314 = vmatmul.bf16.gmra.mxu0 %v181
    %v315 = vpop.f32.mrf.mxu0
    %v316 = vadd.f32 %v222, %v315
    %v317 = vpop.f32.mrf.mxu0
    %v318 = vadd.f32 %v222, %v317
    %319 = vmatmul.bf16.gmra.mxu0 %v182
    %v320 = vpop.f32.mrf.mxu0
    %v321 = vadd.f32 %v222, %v320
    %v322 = vpop.f32.mrf.mxu0
    %v323 = vadd.f32 %v222, %v322
    %324 = vmatmul.bf16.gmra.mxu0 %v183
    %v325 = vpop.f32.mrf.mxu0
    %v326 = vadd.f32 %v222, %v325
    %v327 = vpop.f32.mrf.mxu0
    %v328 = vadd.f32 %v222, %v327
    %329 = vmatmul.bf16.gmra.mxu0 %v184
    %v330 = vpop.f32.mrf.mxu0
    %v331 = vadd.f32 %v222, %v330
    %v332 = vpop.f32.mrf.mxu0
    %v333 = vadd.f32 %v222, %v332
    %334 = vmatmul.bf16.gmra.mxu0 %v185
    %v335 = vpop.f32.mrf.mxu0
    %v336 = vadd.f32 %v222, %v335
    %v337 = vpop.f32.mrf.mxu0
    %v338 = vadd.f32 %v222, %v337
    %339 = vmatmul.bf16.gmra.mxu0 %v186
    %v340 = vpop.f32.mrf.mxu0
    %v341 = vadd.f32 %v222, %v340
    %v342 = vpop.f32.mrf.mxu0
    %v343 = vadd.f32 %v222, %v342
    %344 = vmatmul.bf16.gmra.mxu0 %v187
    %v345 = vpop.f32.mrf.mxu0
    %v346 = vadd.f32 %v222, %v345
    %v347 = vpop.f32.mrf.mxu0
    %v348 = vadd.f32 %v222, %v347
    %349 = vmatmul.bf16.gmra.mxu0 %v188
    %v350 = vpop.f32.mrf.mxu0
    %v351 = vadd.f32 %v222, %v350
    %v352 = vpop.f32.mrf.mxu0
    %v353 = vadd.f32 %v222, %v352
    %354 = vmatmul.bf16.gmra.mxu0 %v189
    %v355 = vpop.f32.mrf.mxu0
    %v356 = vadd.f32 %v222, %v355
    %v357 = vpop.f32.mrf.mxu0
    %v358 = vadd.f32 %v222, %v357
    %359 = vmatmul.bf16.gmra.mxu0 %v190
    %v360 = vpop.f32.mrf.mxu0
    %v361 = vadd.f32 %v222, %v360
    %v362 = vpop.f32.mrf.mxu0
    %v363 = vadd.f32 %v222, %v362
    %364 = vmatmul.bf16.gmra.mxu0 %v191
    %v365 = vpop.f32.mrf.mxu0
    %v366 = vadd.f32 %v222, %v365
    %v367 = vpop.f32.mrf.mxu0
    %v368 = vadd.f32 %v222, %v367
    %369 = vmatmul.bf16.gmra.mxu0 %v192
    %v370 = vpop.f32.mrf.mxu0
    %v371 = vadd.f32 %v222, %v370
    %v372 = vpop.f32.mrf.mxu0
    %v373 = vadd.f32 %v222, %v372
    %374 = vmatmul.bf16.gmra.mxu0 %v193
    %v375 = vpop.f32.mrf.mxu0
    %v376 = vadd.f32 %v222, %v375
    %v377 = vpop.f32.mrf.mxu0
    %v378 = vadd.f32 %v222, %v377
    %379 = vmatmul.bf16.gmra.mxu0 %v194
    %v380 = vpop.f32.mrf.mxu0
    %v381 = vadd.f32 %v222, %v380
    %v382 = vpop.f32.mrf.mxu0
    %v383 = vadd.f32 %v222, %v382
    %384 = vmatmul.bf16.gmra.mxu0 %v195
    %v385 = vpop.f32.mrf.mxu0
    %v386 = vadd.f32 %v222, %v385
    %v387 = vpop.f32.mrf.mxu0
    %v388 = vadd.f32 %v222, %v387
    %389 = vmatmul.bf16.gmra.mxu0 %v196
    %v390 = vpop.f32.mrf.mxu0
    %v391 = vadd.f32 %v222, %v390
    %v392 = vpop.f32.mrf.mxu0
    %v393 = vadd.f32 %v222, %v392
    %394 = vmatmul.bf16.gmra.mxu0 %v197
    %v395 = vpop.f32.mrf.mxu0
    %v396 = vadd.f32 %v222, %v395
    %v397 = vpop.f32.mrf.mxu0
    %v398 = vadd.f32 %v222, %v397
    %399 = vmatmul.bf16.gmra.mxu0 %v198
    %v400 = vpop.f32.mrf.mxu0
    %v401 = vadd.f32 %v222, %v400
    %v402 = vpop.f32.mrf.mxu0
    %v403 = vadd.f32 %v222, %v402
    %404 = vmatmul.bf16.gmra.mxu0 %v199
    %v405 = vpop.f32.mrf.mxu0
    %v406 = vadd.f32 %v222, %v405
    %v407 = vpop.f32.mrf.mxu0
    %v408 = vadd.f32 %v222, %v407
    %409 = vmatmul.bf16.gmra.mxu0 %v200
    %v410 = vpop.f32.mrf.mxu0
    %v411 = vadd.f32 %v222, %v410
    %v412 = vpop.f32.mrf.mxu0
    %v413 = vadd.f32 %v222, %v412
    %414 = vmatmul.bf16.gmra.mxu0 %v201
    %v415 = vpop.f32.mrf.mxu0
    %v416 = vadd.f32 %v222, %v415
    %v417 = vpop.f32.mrf.mxu0
    %v418 = vadd.f32 %v222, %v417
    %419 = vmatmul.bf16.gmra.mxu0 %v202
    %v420 = vpop.f32.mrf.mxu0
    %v421 = vadd.f32 %v222, %v420
    %v422 = vpop.f32.mrf.mxu0
    %v423 = vadd.f32 %v222, %v422
    %424 = vmatmul.bf16.gmra.mxu0 %v203
    %v425 = vpop.f32.mrf.mxu0
    %v426 = vadd.f32 %v222, %v425
    %v427 = vpop.f32.mrf.mxu0
    %v428 = vadd.f32 %v222, %v427
    %429 = vmatmul.bf16.gmra.mxu0 %v204
    %v430 = vpop.f32.mrf.mxu0
    %v431 = vadd.f32 %v222, %v430
    %v432 = vpop.f32.mrf.mxu0
    %v433 = vadd.f32 %v222, %v432
    %434 = vmatmul.bf16.gmra.mxu0 %v205
    %v435 = vpop.f32.mrf.mxu0
    %v436 = vadd.f32 %v222, %v435
    %v437 = vpop.f32.mrf.mxu0
    %v438 = vadd.f32 %v222, %v437
    %439 = vdwg.mxu0
    %440 = vadd.xlane.f32.xlu0 %v281
    %v441 = vpop.xlane.xlu0 %440
    %442 = vadd.xlane.f32.xlu0 %v283
    %v443 = vpop.xlane.xlu0 %442
    %444 = vadd.xlane.f32.xlu0 %v286
    %v445 = vpop.xlane.xlu0 %444
    %446 = vadd.xlane.f32.xlu0 %v288
    %v447 = vpop.xlane.xlu0 %446
    %448 = vadd.xlane.f32.xlu0 %v291
    %v449 = vpop.xlane.xlu0 %448
    %450 = vadd.xlane.f32.xlu0 %v293
    %v451 = vpop.xlane.xlu0 %450
    %452 = vadd.xlane.f32.xlu0 %v296
    %v453 = vpop.xlane.xlu0 %452
    %454 = vadd.xlane.f32.xlu0 %v298
    %v455 = vpop.xlane.xlu0 %454
    %456 = vadd.xlane.f32.xlu0 %v301
    %v457 = vpop.xlane.xlu0 %456
    %458 = vadd.xlane.f32.xlu0 %v303
    %v459 = vpop.xlane.xlu0 %458
    %460 = vadd.xlane.f32.xlu0 %v306
    %v461 = vpop.xlane.xlu0 %460
    %462 = vadd.xlane.f32.xlu0 %v308
    %v463 = vpop.xlane.xlu0 %462
    %464 = vadd.xlane.f32.xlu0 %v311
    %v465 = vpop.xlane.xlu0 %464
    %466 = vadd.xlane.f32.xlu0 %v313
    %v467 = vpop.xlane.xlu0 %466
    %468 = vadd.xlane.f32.xlu0 %v316
    %v469 = vpop.xlane.xlu0 %468
    %470 = vadd.xlane.f32.xlu0 %v318
    %v471 = vpop.xlane.xlu0 %470
    %472 = vadd.xlane.f32.xlu0 %v321
    %v473 = vpop.xlane.xlu0 %472
    %474 = vadd.xlane.f32.xlu0 %v323
    %v475 = vpop.xlane.xlu0 %474
    %476 = vadd.xlane.f32.xlu0 %v326
    %v477 = vpop.xlane.xlu0 %476
    %478 = vadd.xlane.f32.xlu0 %v328
    %v479 = vpop.xlane.xlu0 %478
    %480 = vadd.xlane.f32.xlu0 %v331
    %v481 = vpop.xlane.xlu0 %480
    %482 = vadd.xlane.f32.xlu0 %v333
    %v483 = vpop.xlane.xlu0 %482
    %484 = vadd.xlane.f32.xlu0 %v336
    %v485 = vpop.xlane.xlu0 %484
    %486 = vadd.xlane.f32.xlu0 %v338
    %v487 = vpop.xlane.xlu0 %486
    %488 = vadd.xlane.f32.xlu0 %v341
    %v489 = vpop.xlane.xlu0 %488
    %490 = vadd.xlane.f32.xlu0 %v343
    %v491 = vpop.xlane.xlu0 %490
    %492 = vadd.xlane.f32.xlu0 %v346
    %v493 = vpop.xlane.xlu0 %492
    %494 = vadd.xlane.f32.xlu0 %v348
    %v495 = vpop.xlane.xlu0 %494
    %496 = vadd.xlane.f32.xlu0 %v351
    %v497 = vpop.xlane.xlu0 %496
    %498 = vadd.xlane.f32.xlu0 %v353
    %v499 = vpop.xlane.xlu0 %498
    %500 = vadd.xlane.f32.xlu0 %v356
    %v501 = vpop.xlane.xlu0 %500
    %502 = vadd.xlane.f32.xlu0 %v358
    %v503 = vpop.xlane.xlu0 %502
    %504 = vadd.xlane.f32.xlu0 %v361
    %v505 = vpop.xlane.xlu0 %504
    %506 = vadd.xlane.f32.xlu0 %v363
    %v507 = vpop.xlane.xlu0 %506
    %508 = vadd.xlane.f32.xlu0 %v366
    %v509 = vpop.xlane.xlu0 %508
    %510 = vadd.xlane.f32.xlu0 %v368
    %v511 = vpop.xlane.xlu0 %510
    %512 = vadd.xlane.f32.xlu0 %v371
    %v513 = vpop.xlane.xlu0 %512
    %514 = vadd.xlane.f32.xlu0 %v373
    %v515 = vpop.xlane.xlu0 %514
    %516 = vadd.xlane.f32.xlu0 %v376
    %v517 = vpop.xlane.xlu0 %516
    %518 = vadd.xlane.f32.xlu0 %v378
    %v519 = vpop.xlane.xlu0 %518
    %520 = vadd.xlane.f32.xlu0 %v381
    %v521 = vpop.xlane.xlu0 %520
    %522 = vadd.xlane.f32.xlu0 %v383
    %v523 = vpop.xlane.xlu0 %522
    %524 = vadd.xlane.f32.xlu0 %v386
    %v525 = vpop.xlane.xlu0 %524
    %526 = vadd.xlane.f32.xlu0 %v388
    %v527 = vpop.xlane.xlu0 %526
    %528 = vadd.xlane.f32.xlu0 %v391
    %v529 = vpop.xlane.xlu0 %528
    %530 = vadd.xlane.f32.xlu0 %v393
    %v531 = vpop.xlane.xlu0 %530
    %532 = vadd.xlane.f32.xlu0 %v396
    %v533 = vpop.xlane.xlu0 %532
    %534 = vadd.xlane.f32.xlu0 %v398
    %v535 = vpop.xlane.xlu0 %534
    %536 = vadd.xlane.f32.xlu0 %v401
    %v537 = vpop.xlane.xlu0 %536
    %538 = vadd.xlane.f32.xlu0 %v403
    %v539 = vpop.xlane.xlu0 %538
    %540 = vadd.xlane.f32.xlu0 %v406
    %v541 = vpop.xlane.xlu0 %540
    %542 = vadd.xlane.f32.xlu0 %v408
    %v543 = vpop.xlane.xlu0 %542
    %544 = vadd.xlane.f32.xlu0 %v411
    %v545 = vpop.xlane.xlu0 %544
    %546 = vadd.xlane.f32.xlu0 %v413
    %v547 = vpop.xlane.xlu0 %546
    %548 = vadd.xlane.f32.xlu0 %v416
    %v549 = vpop.xlane.xlu0 %548
    %550 = vadd.xlane.f32.xlu0 %v418
    %v551 = vpop.xlane.xlu0 %550
    %552 = vadd.xlane.f32.xlu0 %v421
    %v553 = vpop.xlane.xlu0 %552
    %554 = vadd.xlane.f32.xlu0 %v423
    %v555 = vpop.xlane.xlu0 %554
    %556 = vadd.xlane.f32.xlu0 %v426
    %v557 = vpop.xlane.xlu0 %556
    %558 = vadd.xlane.f32.xlu0 %v428
    %v559 = vpop.xlane.xlu0 %558
    %560 = vadd.xlane.f32.xlu0 %v431
    %v561 = vpop.xlane.xlu0 %560
    %562 = vadd.xlane.f32.xlu0 %v433
    %v563 = vpop.xlane.xlu0 %562
    %564 = vadd.xlane.f32.xlu0 %v436
    %v565 = vpop.xlane.xlu0 %564
    %566 = vadd.xlane.f32.xlu0 %v438
    %v567 = vpop.xlane.xlu0 %566
    %v568 = vrcp.pop 128.0
    %v569 = vmul.f32 128.0, %v568
    %v570 = vsub.f32 1.0, %v569
    %v571 = vmul.f32 %v568, %v570
    %v572 = vadd.f32 %v568, %v571
    %vm573 = vweird.f32 %v568
    %v574 = vsel %vm573, %v568, %v572
    %v575 = vmul.f32 %v441, %v574
    %v576 = vmul.f32 %v443, %v574
    %v577 = vmul.f32 %v445, %v574
    %v578 = vmul.f32 %v447, %v574
    %v579 = vmul.f32 %v449, %v574
    %v580 = vmul.f32 %v451, %v574
    %v581 = vmul.f32 %v453, %v574
    %v582 = vmul.f32 %v455, %v574
    %v583 = vmul.f32 %v457, %v574
    %v584 = vmul.f32 %v459, %v574
    %v585 = vmul.f32 %v461, %v574
    %v586 = vmul.f32 %v463, %v574
    %v587 = vmul.f32 %v465, %v574
    %v588 = vmul.f32 %v467, %v574
    %v589 = vmul.f32 %v469, %v574
    %v590 = vmul.f32 %v471, %v574
    %v591 = vmul.f32 %v473, %v574
    %v592 = vmul.f32 %v475, %v574
    %v593 = vmul.f32 %v477, %v574
    %v594 = vmul.f32 %v479, %v574
    %v595 = vmul.f32 %v481, %v574
    %v596 = vmul.f32 %v483, %v574
    %v597 = vmul.f32 %v485, %v574
    %v598 = vmul.f32 %v487, %v574
    %v599 = vmul.f32 %v489, %v574
    %v600 = vmul.f32 %v491, %v574
    %v601 = vmul.f32 %v493, %v574
    %v602 = vmul.f32 %v495, %v574
    %v603 = vmul.f32 %v497, %v574
    %v604 = vmul.f32 %v499, %v574
    %v605 = vmul.f32 %v501, %v574
    %v606 = vmul.f32 %v503, %v574
    %v607 = vmul.f32 %v505, %v574
    %v608 = vmul.f32 %v507, %v574
    %v609 = vmul.f32 %v509, %v574
    %v610 = vmul.f32 %v511, %v574
    %v611 = vmul.f32 %v513, %v574
    %v612 = vmul.f32 %v515, %v574
    %v613 = vmul.f32 %v517, %v574
    %v614 = vmul.f32 %v519, %v574
    %v615 = vmul.f32 %v521, %v574
    %v616 = vmul.f32 %v523, %v574
    %v617 = vmul.f32 %v525, %v574
    %v618 = vmul.f32 %v527, %v574
    %v619 = vmul.f32 %v529, %v574
    %v620 = vmul.f32 %v531, %v574
    %v621 = vmul.f32 %v533, %v574
    %v622 = vmul.f32 %v535, %v574
    %v623 = vmul.f32 %v537, %v574
    %v624 = vmul.f32 %v539, %v574
    %v625 = vmul.f32 %v541, %v574
    %v626 = vmul.f32 %v543, %v574
    %v627 = vmul.f32 %v545, %v574
    %v628 = vmul.f32 %v547, %v574
    %v629 = vmul.f32 %v549, %v574
    %v630 = vmul.f32 %v551, %v574
    %v631 = vmul.f32 %v553, %v574
    %v632 = vmul.f32 %v555, %v574
    %v633 = vmul.f32 %v557, %v574
    %v634 = vmul.f32 %v559, %v574
    %v635 = vmul.f32 %v561, %v574
    %v636 = vmul.f32 %v563, %v574
    %v637 = vmul.f32 %v565, %v574
    %v638 = vmul.f32 %v567, %v574
    %v639 = vsub.f32 %v281, %v575
    %v640 = vsub.f32 %v283, %v576
    %v641 = vsub.f32 %v286, %v577
    %v642 = vsub.f32 %v288, %v578
    %v643 = vsub.f32 %v291, %v579
    %v644 = vsub.f32 %v293, %v580
    %v645 = vsub.f32 %v296, %v581
    %v646 = vsub.f32 %v298, %v582
    %v647 = vsub.f32 %v301, %v583
    %v648 = vsub.f32 %v303, %v584
    %v649 = vsub.f32 %v306, %v585
    %v650 = vsub.f32 %v308, %v586
    %v651 = vsub.f32 %v311, %v587
    %v652 = vsub.f32 %v313, %v588
    %v653 = vsub.f32 %v316, %v589
    %v654 = vsub.f32 %v318, %v590
    %v655 = vsub.f32 %v321, %v591
    %v656 = vsub.f32 %v323, %v592
    %v657 = vsub.f32 %v326, %v593
    %v658 = vsub.f32 %v328, %v594
    %v659 = vsub.f32 %v331, %v595
    %v660 = vsub.f32 %v333, %v596
    %v661 = vsub.f32 %v336, %v597
    %v662 = vsub.f32 %v338, %v598
    %v663 = vsub.f32 %v341, %v599
    %v664 = vsub.f32 %v343, %v600
    %v665 = vsub.f32 %v346, %v601
    %v666 = vsub.f32 %v348, %v602
    %v667 = vsub.f32 %v351, %v603
    %v668 = vsub.f32 %v353, %v604
    %v669 = vsub.f32 %v356, %v605
    %v670 = vsub.f32 %v358, %v606
    %v671 = vsub.f32 %v361, %v607
    %v672 = vsub.f32 %v363, %v608
    %v673 = vsub.f32 %v366, %v609
    %v674 = vsub.f32 %v368, %v610
    %v675 = vsub.f32 %v371, %v611
    %v676 = vsub.f32 %v373, %v612
    %v677 = vsub.f32 %v376, %v613
    %v678 = vsub.f32 %v378, %v614
    %v679 = vsub.f32 %v381, %v615
    %v680 = vsub.f32 %v383, %v616
    %v681 = vsub.f32 %v386, %v617
    %v682 = vsub.f32 %v388, %v618
    %v683 = vsub.f32 %v391, %v619
    %v684 = vsub.f32 %v393, %v620
    %v685 = vsub.f32 %v396, %v621
    %v686 = vsub.f32 %v398, %v622
    %v687 = vsub.f32 %v401, %v623
    %v688 = vsub.f32 %v403, %v624
    %v689 = vsub.f32 %v406, %v625
    %v690 = vsub.f32 %v408, %v626
    %v691 = vsub.f32 %v411, %v627
    %v692 = vsub.f32 %v413, %v628
    %v693 = vsub.f32 %v416, %v629
    %v694 = vsub.f32 %v418, %v630
    %v695 = vsub.f32 %v421, %v631
    %v696 = vsub.f32 %v423, %v632
    %v697 = vsub.f32 %v426, %v633
    %v698 = vsub.f32 %v428, %v634
    %v699 = vsub.f32 %v431, %v635
    %v700 = vsub.f32 %v433, %v636
    %v701 = vsub.f32 %v436, %v637
    %v702 = vsub.f32 %v438, %v638
    %v703 = vmul.f32 %v639, %v639
    %v704 = vmul.f32 %v640, %v640
    %v705 = vmul.f32 %v641, %v641
    %v706 = vmul.f32 %v642, %v642
    %v707 = vmul.f32 %v643, %v643
    %v708 = vmul.f32 %v644, %v644
    %v709 = vmul.f32 %v645, %v645
    %v710 = vmul.f32 %v646, %v646
    %v711 = vmul.f32 %v647, %v647
    %v712 = vmul.f32 %v648, %v648
    %v713 = vmul.f32 %v649, %v649
    %v714 = vmul.f32 %v650, %v650
    %v715 = vmul.f32 %v651, %v651
    %v716 = vmul.f32 %v652, %v652
    %v717 = vmul.f32 %v653, %v653
    %v718 = vmul.f32 %v654, %v654
    %v719 = vmul.f32 %v655, %v655
    %v720 = vmul.f32 %v656, %v656
    %v721 = vmul.f32 %v657, %v657
    %v722 = vmul.f32 %v658, %v658
    %v723 = vmul.f32 %v659, %v659
    %v724 = vmul.f32 %v660, %v660
    %v725 = vmul.f32 %v661, %v661
    %v726 = vmul.f32 %v662, %v662
    %v727 = vmul.f32 %v663, %v663
    %v728 = vmul.f32 %v664, %v664
    %v729 = vmul.f32 %v665, %v665
    %v730 = vmul.f32 %v666, %v666
    %v731 = vmul.f32 %v667, %v667
    %v732 = vmul.f32 %v668, %v668
    %v733 = vmul.f32 %v669, %v669
    %v734 = vmul.f32 %v670, %v670
    %v735 = vmul.f32 %v671, %v671
    %v736 = vmul.f32 %v672, %v672
    %v737 = vmul.f32 %v673, %v673
    %v738 = vmul.f32 %v674, %v674
    %v739 = vmul.f32 %v675, %v675
    %v740 = vmul.f32 %v676, %v676
    %v741 = vmul.f32 %v677, %v677
    %v742 = vmul.f32 %v678, %v678
    %v743 = vmul.f32 %v679, %v679
    %v744 = vmul.f32 %v680, %v680
    %v745 = vmul.f32 %v681, %v681
    %v746 = vmul.f32 %v682, %v682
    %v747 = vmul.f32 %v683, %v683
    %v748 = vmul.f32 %v684, %v684
    %v749 = vmul.f32 %v685, %v685
    %v750 = vmul.f32 %v686, %v686
    %v751 = vmul.f32 %v687, %v687
    %v752 = vmul.f32 %v688, %v688
    %v753 = vmul.f32 %v689, %v689
    %v754 = vmul.f32 %v690, %v690
    %v755 = vmul.f32 %v691, %v691
    %v756 = vmul.f32 %v692, %v692
    %v757 = vmul.f32 %v693, %v693
    %v758 = vmul.f32 %v694, %v694
    %v759 = vmul.f32 %v695, %v695
    %v760 = vmul.f32 %v696, %v696
    %v761 = vmul.f32 %v697, %v697
    %v762 = vmul.f32 %v698, %v698
    %v763 = vmul.f32 %v699, %v699
    %v764 = vmul.f32 %v700, %v700
    %v765 = vmul.f32 %v701, %v701
    %v766 = vmul.f32 %v702, %v702
    %767 = vadd.xlane.f32.xlu0 %v703
    %v768 = vpop.xlane.xlu0 %767
    %769 = vadd.xlane.f32.xlu0 %v704
    %v770 = vpop.xlane.xlu0 %769
    %771 = vadd.xlane.f32.xlu0 %v705
    %v772 = vpop.xlane.xlu0 %771
    %773 = vadd.xlane.f32.xlu0 %v706
    %v774 = vpop.xlane.xlu0 %773
    %775 = vadd.xlane.f32.xlu0 %v707
    %v776 = vpop.xlane.xlu0 %775
    %777 = vadd.xlane.f32.xlu0 %v708
    %v778 = vpop.xlane.xlu0 %777
    %779 = vadd.xlane.f32.xlu0 %v709
    %v780 = vpop.xlane.xlu0 %779
    %781 = vadd.xlane.f32.xlu0 %v710
    %v782 = vpop.xlane.xlu0 %781
    %783 = vadd.xlane.f32.xlu0 %v711
    %v784 = vpop.xlane.xlu0 %783
    %785 = vadd.xlane.f32.xlu0 %v712
    %v786 = vpop.xlane.xlu0 %785
    %787 = vadd.xlane.f32.xlu0 %v713
    %v788 = vpop.xlane.xlu0 %787
    %789 = vadd.xlane.f32.xlu0 %v714
    %v790 = vpop.xlane.xlu0 %789
    %791 = vadd.xlane.f32.xlu0 %v715
    %v792 = vpop.xlane.xlu0 %791
    %793 = vadd.xlane.f32.xlu0 %v716
    %v794 = vpop.xlane.xlu0 %793
    %795 = vadd.xlane.f32.xlu0 %v717
    %v796 = vpop.xlane.xlu0 %795
    %797 = vadd.xlane.f32.xlu0 %v718
    %v798 = vpop.xlane.xlu0 %797
    %799 = vadd.xlane.f32.xlu0 %v719
    %v800 = vpop.xlane.xlu0 %799
    %801 = vadd.xlane.f32.xlu0 %v720
    %v802 = vpop.xlane.xlu0 %801
    %803 = vadd.xlane.f32.xlu0 %v721
    %v804 = vpop.xlane.xlu0 %803
    %805 = vadd.xlane.f32.xlu0 %v722
    %v806 = vpop.xlane.xlu0 %805
    %807 = vadd.xlane.f32.xlu0 %v723
    %v808 = vpop.xlane.xlu0 %807
    %809 = vadd.xlane.f32.xlu0 %v724
    %v810 = vpop.xlane.xlu0 %809
    %811 = vadd.xlane.f32.xlu0 %v725
    %v812 = vpop.xlane.xlu0 %811
    %813 = vadd.xlane.f32.xlu0 %v726
    %v814 = vpop.xlane.xlu0 %813
    %815 = vadd.xlane.f32.xlu0 %v727
    %v816 = vpop.xlane.xlu0 %815
    %817 = vadd.xlane.f32.xlu0 %v728
    %v818 = vpop.xlane.xlu0 %817
    %819 = vadd.xlane.f32.xlu0 %v729
    %v820 = vpop.xlane.xlu0 %819
    %821 = vadd.xlane.f32.xlu0 %v730
    %v822 = vpop.xlane.xlu0 %821
    %823 = vadd.xlane.f32.xlu0 %v731
    %v824 = vpop.xlane.xlu0 %823
    %825 = vadd.xlane.f32.xlu0 %v732
    %v826 = vpop.xlane.xlu0 %825
    %827 = vadd.xlane.f32.xlu0 %v733
    %v828 = vpop.xlane.xlu0 %827
    %829 = vadd.xlane.f32.xlu0 %v734
    %v830 = vpop.xlane.xlu0 %829
    %831 = vadd.xlane.f32.xlu0 %v735
    %v832 = vpop.xlane.xlu0 %831
    %833 = vadd.xlane.f32.xlu0 %v736
    %v834 = vpop.xlane.xlu0 %833
    %835 = vadd.xlane.f32.xlu0 %v737
    %v836 = vpop.xlane.xlu0 %835
    %837 = vadd.xlane.f32.xlu0 %v738
    %v838 = vpop.xlane.xlu0 %837
    %839 = vadd.xlane.f32.xlu0 %v739
    %v840 = vpop.xlane.xlu0 %839
    %841 = vadd.xlane.f32.xlu0 %v740
    %v842 = vpop.xlane.xlu0 %841
    %843 = vadd.xlane.f32.xlu0 %v741
    %v844 = vpop.xlane.xlu0 %843
    %845 = vadd.xlane.f32.xlu0 %v742
    %v846 = vpop.xlane.xlu0 %845
    %847 = vadd.xlane.f32.xlu0 %v743
    %v848 = vpop.xlane.xlu0 %847
    %849 = vadd.xlane.f32.xlu0 %v744
    %v850 = vpop.xlane.xlu0 %849
    %851 = vadd.xlane.f32.xlu0 %v745
    %v852 = vpop.xlane.xlu0 %851
    %853 = vadd.xlane.f32.xlu0 %v746
    %v854 = vpop.xlane.xlu0 %853
    %855 = vadd.xlane.f32.xlu0 %v747
    %v856 = vpop.xlane.xlu0 %855
    %857 = vadd.xlane.f32.xlu0 %v748
    %v858 = vpop.xlane.xlu0 %857
    %859 = vadd.xlane.f32.xlu0 %v749
    %v860 = vpop.xlane.xlu0 %859
    %861 = vadd.xlane.f32.xlu0 %v750
    %v862 = vpop.xlane.xlu0 %861
    %863 = vadd.xlane.f32.xlu0 %v751
    %v864 = vpop.xlane.xlu0 %863
    %865 = vadd.xlane.f32.xlu0 %v752
    %v866 = vpop.xlane.xlu0 %865
    %867 = vadd.xlane.f32.xlu0 %v753
    %v868 = vpop.xlane.xlu0 %867
    %869 = vadd.xlane.f32.xlu0 %v754
    %v870 = vpop.xlane.xlu0 %869
    %871 = vadd.xlane.f32.xlu0 %v755
    %v872 = vpop.xlane.xlu0 %871
    %873 = vadd.xlane.f32.xlu0 %v756
    %v874 = vpop.xlane.xlu0 %873
    %875 = vadd.xlane.f32.xlu0 %v757
    %v876 = vpop.xlane.xlu0 %875
    %877 = vadd.xlane.f32.xlu0 %v758
    %v878 = vpop.xlane.xlu0 %877
    %879 = vadd.xlane.f32.xlu0 %v759
    %v880 = vpop.xlane.xlu0 %879
    %881 = vadd.xlane.f32.xlu0 %v760
    %v882 = vpop.xlane.xlu0 %881
    %883 = vadd.xlane.f32.xlu0 %v761
    %v884 = vpop.xlane.xlu0 %883
    %885 = vadd.xlane.f32.xlu0 %v762
    %v886 = vpop.xlane.xlu0 %885
    %887 = vadd.xlane.f32.xlu0 %v763
    %v888 = vpop.xlane.xlu0 %887
    %889 = vadd.xlane.f32.xlu0 %v764
    %v890 = vpop.xlane.xlu0 %889
    %891 = vadd.xlane.f32.xlu0 %v765
    %v892 = vpop.xlane.xlu0 %891
    %893 = vadd.xlane.f32.xlu0 %v766
    %v894 = vpop.xlane.xlu0 %893
    %v895 = vmul.f32 %v768, %v574
    %v896 = vmul.f32 %v770, %v574
    %v897 = vmul.f32 %v772, %v574
    %v898 = vmul.f32 %v774, %v574
    %v899 = vmul.f32 %v776, %v574
    %v900 = vmul.f32 %v778, %v574
    %v901 = vmul.f32 %v780, %v574
    %v902 = vmul.f32 %v782, %v574
    %v903 = vmul.f32 %v784, %v574
    %v904 = vmul.f32 %v786, %v574
    %v905 = vmul.f32 %v788, %v574
    %v906 = vmul.f32 %v790, %v574
    %v907 = vmul.f32 %v792, %v574
    %v908 = vmul.f32 %v794, %v574
    %v909 = vmul.f32 %v796, %v574
    %v910 = vmul.f32 %v798, %v574
    %v911 = vmul.f32 %v800, %v574
    %v912 = vmul.f32 %v802, %v574
    %v913 = vmul.f32 %v804, %v574
    %v914 = vmul.f32 %v806, %v574
    %v915 = vmul.f32 %v808, %v574
    %v916 = vmul.f32 %v810, %v574
    %v917 = vmul.f32 %v812, %v574
    %v918 = vmul.f32 %v814, %v574
    %v919 = vmul.f32 %v816, %v574
    %v920 = vmul.f32 %v818, %v574
    %v921 = vmul.f32 %v820, %v574
    %v922 = vmul.f32 %v822, %v574
    %v923 = vmul.f32 %v824, %v574
    %v924 = vmul.f32 %v826, %v574
    %v925 = vmul.f32 %v828, %v574
    %v926 = vmul.f32 %v830, %v574
    %v927 = vmul.f32 %v832, %v574
    %v928 = vmul.f32 %v834, %v574
    %v929 = vmul.f32 %v836, %v574
    %v930 = vmul.f32 %v838, %v574
    %v931 = vmul.f32 %v840, %v574
    %v932 = vmul.f32 %v842, %v574
    %v933 = vmul.f32 %v844, %v574
    %v934 = vmul.f32 %v846, %v574
    %v935 = vmul.f32 %v848, %v574
    %v936 = vmul.f32 %v850, %v574
    %v937 = vmul.f32 %v852, %v574
    %v938 = vmul.f32 %v854, %v574
    %v939 = vmul.f32 %v856, %v574
    %v940 = vmul.f32 %v858, %v574
    %v941 = vmul.f32 %v860, %v574
    %v942 = vmul.f32 %v862, %v574
    %v943 = vmul.f32 %v864, %v574
    %v944 = vmul.f32 %v866, %v574
    %v945 = vmul.f32 %v868, %v574
    %v946 = vmul.f32 %v870, %v574
    %v947 = vmul.f32 %v872, %v574
    %v948 = vmul.f32 %v874, %v574
    %v949 = vmul.f32 %v876, %v574
    %v950 = vmul.f32 %v878, %v574
    %v951 = vmul.f32 %v880, %v574
    %v952 = vmul.f32 %v882, %v574
    %v953 = vmul.f32 %v884, %v574
    %v954 = vmul.f32 %v886, %v574
    %v955 = vmul.f32 %v888, %v574
    %v956 = vmul.f32 %v890, %v574
    %v957 = vmul.f32 %v892, %v574
    %v958 = vmul.f32 %v894, %v574
    %v959 = vadd.f32 %v895, 1e-05
    %v960 = vadd.f32 %v896, 1e-05
    %v961 = vadd.f32 %v897, 1e-05
    %v962 = vadd.f32 %v898, 1e-05
    %v963 = vadd.f32 %v899, 1e-05
    %v964 = vadd.f32 %v900, 1e-05
    %v965 = vadd.f32 %v901, 1e-05
    %v966 = vadd.f32 %v902, 1e-05
    %v967 = vadd.f32 %v903, 1e-05
    %v968 = vadd.f32 %v904, 1e-05
    %v969 = vadd.f32 %v905, 1e-05
    %v970 = vadd.f32 %v906, 1e-05
    %v971 = vadd.f32 %v907, 1e-05
    %v972 = vadd.f32 %v908, 1e-05
    %v973 = vadd.f32 %v909, 1e-05
    %v974 = vadd.f32 %v910, 1e-05
    %v975 = vadd.f32 %v911, 1e-05
    %v976 = vadd.f32 %v912, 1e-05
    %v977 = vadd.f32 %v913, 1e-05
    %v978 = vadd.f32 %v914, 1e-05
    %v979 = vadd.f32 %v915, 1e-05
    %v980 = vadd.f32 %v916, 1e-05
    %v981 = vadd.f32 %v917, 1e-05
    %v982 = vadd.f32 %v918, 1e-05
    %v983 = vadd.f32 %v919, 1e-05
    %v984 = vadd.f32 %v920, 1e-05
    %v985 = vadd.f32 %v921, 1e-05
    %v986 = vadd.f32 %v922, 1e-05
    %v987 = vadd.f32 %v923, 1e-05
    %v988 = vadd.f32 %v924, 1e-05
    %v989 = vadd.f32 %v925, 1e-05
    %v990 = vadd.f32 %v926, 1e-05
    %v991 = vadd.f32 %v927, 1e-05
    %v992 = vadd.f32 %v928, 1e-05
    %v993 = vadd.f32 %v929, 1e-05
    %v994 = vadd.f32 %v930, 1e-05
    %v995 = vadd.f32 %v931, 1e-05
    %v996 = vadd.f32 %v932, 1e-05
    %v997 = vadd.f32 %v933, 1e-05
    %v998 = vadd.f32 %v934, 1e-05
    %v999 = vadd.f32 %v935, 1e-05
    %v1000 = vadd.f32 %v936, 1e-05
    %v1001 = vadd.f32 %v937, 1e-05
    %v1002 = vadd.f32 %v938, 1e-05
    %v1003 = vadd.f32 %v939, 1e-05
    %v1004 = vadd.f32 %v940, 1e-05
    %v1005 = vadd.f32 %v941, 1e-05
    %v1006 = vadd.f32 %v942, 1e-05
    %v1007 = vadd.f32 %v943, 1e-05
    %v1008 = vadd.f32 %v944, 1e-05
    %v1009 = vadd.f32 %v945, 1e-05
    %v1010 = vadd.f32 %v946, 1e-05
    %v1011 = vadd.f32 %v947, 1e-05
    %v1012 = vadd.f32 %v948, 1e-05
    %v1013 = vadd.f32 %v949, 1e-05
    %v1014 = vadd.f32 %v950, 1e-05
    %v1015 = vadd.f32 %v951, 1e-05
    %v1016 = vadd.f32 %v952, 1e-05
    %v1017 = vadd.f32 %v953, 1e-05
    %v1018 = vadd.f32 %v954, 1e-05
    %v1019 = vadd.f32 %v955, 1e-05
    %v1020 = vadd.f32 %v956, 1e-05
    %v1021 = vadd.f32 %v957, 1e-05
    %v1022 = vadd.f32 %v958, 1e-05
    %v1023 = vrsqrt.pop %v959
    %v1024 = vmul.f32 %v1023, %v959
    %v1025 = vmul.f32 %v1024, %v1023
    %v1026 = vmul.f32 0.5, %v1025
    %v1027 = vsub.f32 1.5, %v1026
    %v1028 = vmul.f32 %v1023, %v1027
    %vm1029 = vweird.f32 %v959
    %vm1030 = vweird.f32 %v1023
    %vm1031 = vmor %vm1029, %vm1030
    %v1032 = vsel %vm1031, %v1023, %v1028
    %v1033 = vrsqrt.pop %v960
    %v1034 = vmul.f32 %v1033, %v960
    %v1035 = vmul.f32 %v1034, %v1033
    %v1036 = vmul.f32 0.5, %v1035
    %v1037 = vsub.f32 1.5, %v1036
    %v1038 = vmul.f32 %v1033, %v1037
    %vm1039 = vweird.f32 %v960
    %vm1040 = vweird.f32 %v1033
    %vm1041 = vmor %vm1039, %vm1040
    %v1042 = vsel %vm1041, %v1033, %v1038
    %v1043 = vrsqrt.pop %v961
    %v1044 = vmul.f32 %v1043, %v961
    %v1045 = vmul.f32 %v1044, %v1043
    %v1046 = vmul.f32 0.5, %v1045
    %v1047 = vsub.f32 1.5, %v1046
    %v1048 = vmul.f32 %v1043, %v1047
    %vm1049 = vweird.f32 %v961
    %vm1050 = vweird.f32 %v1043
    %vm1051 = vmor %vm1049, %vm1050
    %v1052 = vsel %vm1051, %v1043, %v1048
    %v1053 = vrsqrt.pop %v962
    %v1054 = vmul.f32 %v1053, %v962
    %v1055 = vmul.f32 %v1054, %v1053
    %v1056 = vmul.f32 0.5, %v1055
    %v1057 = vsub.f32 1.5, %v1056
    %v1058 = vmul.f32 %v1053, %v1057
    %vm1059 = vweird.f32 %v962
    %vm1060 = vweird.f32 %v1053
    %vm1061 = vmor %vm1059, %vm1060
    %v1062 = vsel %vm1061, %v1053, %v1058
    %v1063 = vrsqrt.pop %v963
    %v1064 = vmul.f32 %v1063, %v963
    %v1065 = vmul.f32 %v1064, %v1063
    %v1066 = vmul.f32 0.5, %v1065
    %v1067 = vsub.f32 1.5, %v1066
    %v1068 = vmul.f32 %v1063, %v1067
    %vm1069 = vweird.f32 %v963
    %vm1070 = vweird.f32 %v1063
    %vm1071 = vmor %vm1069, %vm1070
    %v1072 = vsel %vm1071, %v1063, %v1068
    %v1073 = vrsqrt.pop %v964
    %v1074 = vmul.f32 %v1073, %v964
    %v1075 = vmul.f32 %v1074, %v1073
    %v1076 = vmul.f32 0.5, %v1075
    %v1077 = vsub.f32 1.5, %v1076
    %v1078 = vmul.f32 %v1073, %v1077
    %vm1079 = vweird.f32 %v964
    %vm1080 = vweird.f32 %v1073
    %vm1081 = vmor %vm1079, %vm1080
    %v1082 = vsel %vm1081, %v1073, %v1078
    %v1083 = vrsqrt.pop %v965
    %v1084 = vmul.f32 %v1083, %v965
    %v1085 = vmul.f32 %v1084, %v1083
    %v1086 = vmul.f32 0.5, %v1085
    %v1087 = vsub.f32 1.5, %v1086
    %v1088 = vmul.f32 %v1083, %v1087
    %vm1089 = vweird.f32 %v965
    %vm1090 = vweird.f32 %v1083
    %vm1091 = vmor %vm1089, %vm1090
    %v1092 = vsel %vm1091, %v1083, %v1088
    %v1093 = vrsqrt.pop %v966
    %v1094 = vmul.f32 %v1093, %v966
    %v1095 = vmul.f32 %v1094, %v1093
    %v1096 = vmul.f32 0.5, %v1095
    %v1097 = vsub.f32 1.5, %v1096
    %v1098 = vmul.f32 %v1093, %v1097
    %vm1099 = vweird.f32 %v966
    %vm1100 = vweird.f32 %v1093
    %vm1101 = vmor %vm1099, %vm1100
    %v1102 = vsel %vm1101, %v1093, %v1098
    %v1103 = vrsqrt.pop %v967
    %v1104 = vmul.f32 %v1103, %v967
    %v1105 = vmul.f32 %v1104, %v1103
    %v1106 = vmul.f32 0.5, %v1105
    %v1107 = vsub.f32 1.5, %v1106
    %v1108 = vmul.f32 %v1103, %v1107
    %vm1109 = vweird.f32 %v967
    %vm1110 = vweird.f32 %v1103
    %vm1111 = vmor %vm1109, %vm1110
    %v1112 = vsel %vm1111, %v1103, %v1108
    %v1113 = vrsqrt.pop %v968
    %v1114 = vmul.f32 %v1113, %v968
    %v1115 = vmul.f32 %v1114, %v1113
    %v1116 = vmul.f32 0.5, %v1115
    %v1117 = vsub.f32 1.5, %v1116
    %v1118 = vmul.f32 %v1113, %v1117
    %vm1119 = vweird.f32 %v968
    %vm1120 = vweird.f32 %v1113
    %vm1121 = vmor %vm1119, %vm1120
    %v1122 = vsel %vm1121, %v1113, %v1118
    %v1123 = vrsqrt.pop %v969
    %v1124 = vmul.f32 %v1123, %v969
    %v1125 = vmul.f32 %v1124, %v1123
    %v1126 = vmul.f32 0.5, %v1125
    %v1127 = vsub.f32 1.5, %v1126
    %v1128 = vmul.f32 %v1123, %v1127
    %vm1129 = vweird.f32 %v969
    %vm1130 = vweird.f32 %v1123
    %vm1131 = vmor %vm1129, %vm1130
    %v1132 = vsel %vm1131, %v1123, %v1128
    %v1133 = vrsqrt.pop %v970
    %v1134 = vmul.f32 %v1133, %v970
    %v1135 = vmul.f32 %v1134, %v1133
    %v1136 = vmul.f32 0.5, %v1135
    %v1137 = vsub.f32 1.5, %v1136
    %v1138 = vmul.f32 %v1133, %v1137
    %vm1139 = vweird.f32 %v970
    %vm1140 = vweird.f32 %v1133
    %vm1141 = vmor %vm1139, %vm1140
    %v1142 = vsel %vm1141, %v1133, %v1138
    %v1143 = vrsqrt.pop %v971
    %v1144 = vmul.f32 %v1143, %v971
    %v1145 = vmul.f32 %v1144, %v1143
    %v1146 = vmul.f32 0.5, %v1145
    %v1147 = vsub.f32 1.5, %v1146
    %v1148 = vmul.f32 %v1143, %v1147
    %vm1149 = vweird.f32 %v971
    %vm1150 = vweird.f32 %v1143
    %vm1151 = vmor %vm1149, %vm1150
    %v1152 = vsel %vm1151, %v1143, %v1148
    %v1153 = vrsqrt.pop %v972
    %v1154 = vmul.f32 %v1153, %v972
    %v1155 = vmul.f32 %v1154, %v1153
    %v1156 = vmul.f32 0.5, %v1155
    %v1157 = vsub.f32 1.5, %v1156
    %v1158 = vmul.f32 %v1153, %v1157
    %vm1159 = vweird.f32 %v972
    %vm1160 = vweird.f32 %v1153
    %vm1161 = vmor %vm1159, %vm1160
    %v1162 = vsel %vm1161, %v1153, %v1158
    %v1163 = vrsqrt.pop %v973
    %v1164 = vmul.f32 %v1163, %v973
    %v1165 = vmul.f32 %v1164, %v1163
    %v1166 = vmul.f32 0.5, %v1165
    %v1167 = vsub.f32 1.5, %v1166
    %v1168 = vmul.f32 %v1163, %v1167
    %vm1169 = vweird.f32 %v973
    %vm1170 = vweird.f32 %v1163
    %vm1171 = vmor %vm1169, %vm1170
    %v1172 = vsel %vm1171, %v1163, %v1168
    %v1173 = vrsqrt.pop %v974
    %v1174 = vmul.f32 %v1173, %v974
    %v1175 = vmul.f32 %v1174, %v1173
    %v1176 = vmul.f32 0.5, %v1175
    %v1177 = vsub.f32 1.5, %v1176
    %v1178 = vmul.f32 %v1173, %v1177
    %vm1179 = vweird.f32 %v974
    %vm1180 = vweird.f32 %v1173
    %vm1181 = vmor %vm1179, %vm1180
    %v1182 = vsel %vm1181, %v1173, %v1178
    %v1183 = vrsqrt.pop %v975
    %v1184 = vmul.f32 %v1183, %v975
    %v1185 = vmul.f32 %v1184, %v1183
    %v1186 = vmul.f32 0.5, %v1185
    %v1187 = vsub.f32 1.5, %v1186
    %v1188 = vmul.f32 %v1183, %v1187
    %vm1189 = vweird.f32 %v975
    %vm1190 = vweird.f32 %v1183
    %vm1191 = vmor %vm1189, %vm1190
    %v1192 = vsel %vm1191, %v1183, %v1188
    %v1193 = vrsqrt.pop %v976
    %v1194 = vmul.f32 %v1193, %v976
    %v1195 = vmul.f32 %v1194, %v1193
    %v1196 = vmul.f32 0.5, %v1195
    %v1197 = vsub.f32 1.5, %v1196
    %v1198 = vmul.f32 %v1193, %v1197
    %vm1199 = vweird.f32 %v976
    %vm1200 = vweird.f32 %v1193
    %vm1201 = vmor %vm1199, %vm1200
    %v1202 = vsel %vm1201, %v1193, %v1198
    %v1203 = vrsqrt.pop %v977
    %v1204 = vmul.f32 %v1203, %v977
    %v1205 = vmul.f32 %v1204, %v1203
    %v1206 = vmul.f32 0.5, %v1205
    %v1207 = vsub.f32 1.5, %v1206
    %v1208 = vmul.f32 %v1203, %v1207
    %vm1209 = vweird.f32 %v977
    %vm1210 = vweird.f32 %v1203
    %vm1211 = vmor %vm1209, %vm1210
    %v1212 = vsel %vm1211, %v1203, %v1208
    %v1213 = vrsqrt.pop %v978
    %v1214 = vmul.f32 %v1213, %v978
    %v1215 = vmul.f32 %v1214, %v1213
    %v1216 = vmul.f32 0.5, %v1215
    %v1217 = vsub.f32 1.5, %v1216
    %v1218 = vmul.f32 %v1213, %v1217
    %vm1219 = vweird.f32 %v978
    %vm1220 = vweird.f32 %v1213
    %vm1221 = vmor %vm1219, %vm1220
    %v1222 = vsel %vm1221, %v1213, %v1218
    %v1223 = vrsqrt.pop %v979
    %v1224 = vmul.f32 %v1223, %v979
    %v1225 = vmul.f32 %v1224, %v1223
    %v1226 = vmul.f32 0.5, %v1225
    %v1227 = vsub.f32 1.5, %v1226
    %v1228 = vmul.f32 %v1223, %v1227
    %vm1229 = vweird.f32 %v979
    %vm1230 = vweird.f32 %v1223
    %vm1231 = vmor %vm1229, %vm1230
    %v1232 = vsel %vm1231, %v1223, %v1228
    %v1233 = vrsqrt.pop %v980
    %v1234 = vmul.f32 %v1233, %v980
    %v1235 = vmul.f32 %v1234, %v1233
    %v1236 = vmul.f32 0.5, %v1235
    %v1237 = vsub.f32 1.5, %v1236
    %v1238 = vmul.f32 %v1233, %v1237
    %vm1239 = vweird.f32 %v980
    %vm1240 = vweird.f32 %v1233
    %vm1241 = vmor %vm1239, %vm1240
    %v1242 = vsel %vm1241, %v1233, %v1238
    %v1243 = vrsqrt.pop %v981
    %v1244 = vmul.f32 %v1243, %v981
    %v1245 = vmul.f32 %v1244, %v1243
    %v1246 = vmul.f32 0.5, %v1245
    %v1247 = vsub.f32 1.5, %v1246
    %v1248 = vmul.f32 %v1243, %v1247
    %vm1249 = vweird.f32 %v981
    %vm1250 = vweird.f32 %v1243
    %vm1251 = vmor %vm1249, %vm1250
    %v1252 = vsel %vm1251, %v1243, %v1248
    %v1253 = vrsqrt.pop %v982
    %v1254 = vmul.f32 %v1253, %v982
    %v1255 = vmul.f32 %v1254, %v1253
    %v1256 = vmul.f32 0.5, %v1255
    %v1257 = vsub.f32 1.5, %v1256
    %v1258 = vmul.f32 %v1253, %v1257
    %vm1259 = vweird.f32 %v982
    %vm1260 = vweird.f32 %v1253
    %vm1261 = vmor %vm1259, %vm1260
    %v1262 = vsel %vm1261, %v1253, %v1258
    %v1263 = vrsqrt.pop %v983
    %v1264 = vmul.f32 %v1263, %v983
    %v1265 = vmul.f32 %v1264, %v1263
    %v1266 = vmul.f32 0.5, %v1265
    %v1267 = vsub.f32 1.5, %v1266
    %v1268 = vmul.f32 %v1263, %v1267
    %vm1269 = vweird.f32 %v983
    %vm1270 = vweird.f32 %v1263
    %vm1271 = vmor %vm1269, %vm1270
    %v1272 = vsel %vm1271, %v1263, %v1268
    %v1273 = vrsqrt.pop %v984
    %v1274 = vmul.f32 %v1273, %v984
    %v1275 = vmul.f32 %v1274, %v1273
    %v1276 = vmul.f32 0.5, %v1275
    %v1277 = vsub.f32 1.5, %v1276
    %v1278 = vmul.f32 %v1273, %v1277
    %vm1279 = vweird.f32 %v984
    %vm1280 = vweird.f32 %v1273
    %vm1281 = vmor %vm1279, %vm1280
    %v1282 = vsel %vm1281, %v1273, %v1278
    %v1283 = vrsqrt.pop %v985
    %v1284 = vmul.f32 %v1283, %v985
    %v1285 = vmul.f32 %v1284, %v1283
    %v1286 = vmul.f32 0.5, %v1285
    %v1287 = vsub.f32 1.5, %v1286
    %v1288 = vmul.f32 %v1283, %v1287
    %vm1289 = vweird.f32 %v985
    %vm1290 = vweird.f32 %v1283
    %vm1291 = vmor %vm1289, %vm1290
    %v1292 = vsel %vm1291, %v1283, %v1288
    %v1293 = vrsqrt.pop %v986
    %v1294 = vmul.f32 %v1293, %v986
    %v1295 = vmul.f32 %v1294, %v1293
    %v1296 = vmul.f32 0.5, %v1295
    %v1297 = vsub.f32 1.5, %v1296
    %v1298 = vmul.f32 %v1293, %v1297
    %vm1299 = vweird.f32 %v986
    %vm1300 = vweird.f32 %v1293
    %vm1301 = vmor %vm1299, %vm1300
    %v1302 = vsel %vm1301, %v1293, %v1298
    %v1303 = vrsqrt.pop %v987
    %v1304 = vmul.f32 %v1303, %v987
    %v1305 = vmul.f32 %v1304, %v1303
    %v1306 = vmul.f32 0.5, %v1305
    %v1307 = vsub.f32 1.5, %v1306
    %v1308 = vmul.f32 %v1303, %v1307
    %vm1309 = vweird.f32 %v987
    %vm1310 = vweird.f32 %v1303
    %vm1311 = vmor %vm1309, %vm1310
    %v1312 = vsel %vm1311, %v1303, %v1308
    %v1313 = vrsqrt.pop %v988
    %v1314 = vmul.f32 %v1313, %v988
    %v1315 = vmul.f32 %v1314, %v1313
    %v1316 = vmul.f32 0.5, %v1315
    %v1317 = vsub.f32 1.5, %v1316
    %v1318 = vmul.f32 %v1313, %v1317
    %vm1319 = vweird.f32 %v988
    %vm1320 = vweird.f32 %v1313
    %vm1321 = vmor %vm1319, %vm1320
    %v1322 = vsel %vm1321, %v1313, %v1318
    %v1323 = vrsqrt.pop %v989
    %v1324 = vmul.f32 %v1323, %v989
    %v1325 = vmul.f32 %v1324, %v1323
    %v1326 = vmul.f32 0.5, %v1325
    %v1327 = vsub.f32 1.5, %v1326
    %v1328 = vmul.f32 %v1323, %v1327
    %vm1329 = vweird.f32 %v989
    %vm1330 = vweird.f32 %v1323
    %vm1331 = vmor %vm1329, %vm1330
    %v1332 = vsel %vm1331, %v1323, %v1328
    %v1333 = vrsqrt.pop %v990
    %v1334 = vmul.f32 %v1333, %v990
    %v1335 = vmul.f32 %v1334, %v1333
    %v1336 = vmul.f32 0.5, %v1335
    %v1337 = vsub.f32 1.5, %v1336
    %v1338 = vmul.f32 %v1333, %v1337
    %vm1339 = vweird.f32 %v990
    %vm1340 = vweird.f32 %v1333
    %vm1341 = vmor %vm1339, %vm1340
    %v1342 = vsel %vm1341, %v1333, %v1338
    %v1343 = vrsqrt.pop %v991
    %v1344 = vmul.f32 %v1343, %v991
    %v1345 = vmul.f32 %v1344, %v1343
    %v1346 = vmul.f32 0.5, %v1345
    %v1347 = vsub.f32 1.5, %v1346
    %v1348 = vmul.f32 %v1343, %v1347
    %vm1349 = vweird.f32 %v991
    %vm1350 = vweird.f32 %v1343
    %vm1351 = vmor %vm1349, %vm1350
    %v1352 = vsel %vm1351, %v1343, %v1348
    %v1353 = vrsqrt.pop %v992
    %v1354 = vmul.f32 %v1353, %v992
    %v1355 = vmul.f32 %v1354, %v1353
    %v1356 = vmul.f32 0.5, %v1355
    %v1357 = vsub.f32 1.5, %v1356
    %v1358 = vmul.f32 %v1353, %v1357
    %vm1359 = vweird.f32 %v992
    %vm1360 = vweird.f32 %v1353
    %vm1361 = vmor %vm1359, %vm1360
    %v1362 = vsel %vm1361, %v1353, %v1358
    %v1363 = vrsqrt.pop %v993
    %v1364 = vmul.f32 %v1363, %v993
    %v1365 = vmul.f32 %v1364, %v1363
    %v1366 = vmul.f32 0.5, %v1365
    %v1367 = vsub.f32 1.5, %v1366
    %v1368 = vmul.f32 %v1363, %v1367
    %vm1369 = vweird.f32 %v993
    %vm1370 = vweird.f32 %v1363
    %vm1371 = vmor %vm1369, %vm1370
    %v1372 = vsel %vm1371, %v1363, %v1368
    %v1373 = vrsqrt.pop %v994
    %v1374 = vmul.f32 %v1373, %v994
    %v1375 = vmul.f32 %v1374, %v1373
    %v1376 = vmul.f32 0.5, %v1375
    %v1377 = vsub.f32 1.5, %v1376
    %v1378 = vmul.f32 %v1373, %v1377
    %vm1379 = vweird.f32 %v994
    %vm1380 = vweird.f32 %v1373
    %vm1381 = vmor %vm1379, %vm1380
    %v1382 = vsel %vm1381, %v1373, %v1378
    %v1383 = vrsqrt.pop %v995
    %v1384 = vmul.f32 %v1383, %v995
    %v1385 = vmul.f32 %v1384, %v1383
    %v1386 = vmul.f32 0.5, %v1385
    %v1387 = vsub.f32 1.5, %v1386
    %v1388 = vmul.f32 %v1383, %v1387
    %vm1389 = vweird.f32 %v995
    %vm1390 = vweird.f32 %v1383
    %vm1391 = vmor %vm1389, %vm1390
    %v1392 = vsel %vm1391, %v1383, %v1388
    %v1393 = vrsqrt.pop %v996
    %v1394 = vmul.f32 %v1393, %v996
    %v1395 = vmul.f32 %v1394, %v1393
    %v1396 = vmul.f32 0.5, %v1395
    %v1397 = vsub.f32 1.5, %v1396
    %v1398 = vmul.f32 %v1393, %v1397
    %vm1399 = vweird.f32 %v996
    %vm1400 = vweird.f32 %v1393
    %vm1401 = vmor %vm1399, %vm1400
    %v1402 = vsel %vm1401, %v1393, %v1398
    %v1403 = vrsqrt.pop %v997
    %v1404 = vmul.f32 %v1403, %v997
    %v1405 = vmul.f32 %v1404, %v1403
    %v1406 = vmul.f32 0.5, %v1405
    %v1407 = vsub.f32 1.5, %v1406
    %v1408 = vmul.f32 %v1403, %v1407
    %vm1409 = vweird.f32 %v997
    %vm1410 = vweird.f32 %v1403
    %vm1411 = vmor %vm1409, %vm1410
    %v1412 = vsel %vm1411, %v1403, %v1408
    %v1413 = vrsqrt.pop %v998
    %v1414 = vmul.f32 %v1413, %v998
    %v1415 = vmul.f32 %v1414, %v1413
    %v1416 = vmul.f32 0.5, %v1415
    %v1417 = vsub.f32 1.5, %v1416
    %v1418 = vmul.f32 %v1413, %v1417
    %vm1419 = vweird.f32 %v998
    %vm1420 = vweird.f32 %v1413
    %vm1421 = vmor %vm1419, %vm1420
    %v1422 = vsel %vm1421, %v1413, %v1418
    %v1423 = vrsqrt.pop %v999
    %v1424 = vmul.f32 %v1423, %v999
    %v1425 = vmul.f32 %v1424, %v1423
    %v1426 = vmul.f32 0.5, %v1425
    %v1427 = vsub.f32 1.5, %v1426
    %v1428 = vmul.f32 %v1423, %v1427
    %vm1429 = vweird.f32 %v999
    %vm1430 = vweird.f32 %v1423
    %vm1431 = vmor %vm1429, %vm1430
    %v1432 = vsel %vm1431, %v1423, %v1428
    %v1433 = vrsqrt.pop %v1000
    %v1434 = vmul.f32 %v1433, %v1000
    %v1435 = vmul.f32 %v1434, %v1433
    %v1436 = vmul.f32 0.5, %v1435
    %v1437 = vsub.f32 1.5, %v1436
    %v1438 = vmul.f32 %v1433, %v1437
    %vm1439 = vweird.f32 %v1000
    %vm1440 = vweird.f32 %v1433
    %vm1441 = vmor %vm1439, %vm1440
    %v1442 = vsel %vm1441, %v1433, %v1438
    %v1443 = vrsqrt.pop %v1001
    %v1444 = vmul.f32 %v1443, %v1001
    %v1445 = vmul.f32 %v1444, %v1443
    %v1446 = vmul.f32 0.5, %v1445
    %v1447 = vsub.f32 1.5, %v1446
    %v1448 = vmul.f32 %v1443, %v1447
    %vm1449 = vweird.f32 %v1001
    %vm1450 = vweird.f32 %v1443
    %vm1451 = vmor %vm1449, %vm1450
    %v1452 = vsel %vm1451, %v1443, %v1448
    %v1453 = vrsqrt.pop %v1002
    %v1454 = vmul.f32 %v1453, %v1002
    %v1455 = vmul.f32 %v1454, %v1453
    %v1456 = vmul.f32 0.5, %v1455
    %v1457 = vsub.f32 1.5, %v1456
    %v1458 = vmul.f32 %v1453, %v1457
    %vm1459 = vweird.f32 %v1002
    %vm1460 = vweird.f32 %v1453
    %vm1461 = vmor %vm1459, %vm1460
    %v1462 = vsel %vm1461, %v1453, %v1458
    %v1463 = vrsqrt.pop %v1003
    %v1464 = vmul.f32 %v1463, %v1003
    %v1465 = vmul.f32 %v1464, %v1463
    %v1466 = vmul.f32 0.5, %v1465
    %v1467 = vsub.f32 1.5, %v1466
    %v1468 = vmul.f32 %v1463, %v1467
    %vm1469 = vweird.f32 %v1003
    %vm1470 = vweird.f32 %v1463
    %vm1471 = vmor %vm1469, %vm1470
    %v1472 = vsel %vm1471, %v1463, %v1468
    %v1473 = vrsqrt.pop %v1004
    %v1474 = vmul.f32 %v1473, %v1004
    %v1475 = vmul.f32 %v1474, %v1473
    %v1476 = vmul.f32 0.5, %v1475
    %v1477 = vsub.f32 1.5, %v1476
    %v1478 = vmul.f32 %v1473, %v1477
    %vm1479 = vweird.f32 %v1004
    %vm1480 = vweird.f32 %v1473
    %vm1481 = vmor %vm1479, %vm1480
    %v1482 = vsel %vm1481, %v1473, %v1478
    %v1483 = vrsqrt.pop %v1005
    %v1484 = vmul.f32 %v1483, %v1005
    %v1485 = vmul.f32 %v1484, %v1483
    %v1486 = vmul.f32 0.5, %v1485
    %v1487 = vsub.f32 1.5, %v1486
    %v1488 = vmul.f32 %v1483, %v1487
    %vm1489 = vweird.f32 %v1005
    %vm1490 = vweird.f32 %v1483
    %vm1491 = vmor %vm1489, %vm1490
    %v1492 = vsel %vm1491, %v1483, %v1488
    %v1493 = vrsqrt.pop %v1006
    %v1494 = vmul.f32 %v1493, %v1006
    %v1495 = vmul.f32 %v1494, %v1493
    %v1496 = vmul.f32 0.5, %v1495
    %v1497 = vsub.f32 1.5, %v1496
    %v1498 = vmul.f32 %v1493, %v1497
    %vm1499 = vweird.f32 %v1006
    %vm1500 = vweird.f32 %v1493
    %vm1501 = vmor %vm1499, %vm1500
    %v1502 = vsel %vm1501, %v1493, %v1498
    %v1503 = vrsqrt.pop %v1007
    %v1504 = vmul.f32 %v1503, %v1007
    %v1505 = vmul.f32 %v1504, %v1503
    %v1506 = vmul.f32 0.5, %v1505
    %v1507 = vsub.f32 1.5, %v1506
    %v1508 = vmul.f32 %v1503, %v1507
    %vm1509 = vweird.f32 %v1007
    %vm1510 = vweird.f32 %v1503
    %vm1511 = vmor %vm1509, %vm1510
    %v1512 = vsel %vm1511, %v1503, %v1508
    %v1513 = vrsqrt.pop %v1008
    %v1514 = vmul.f32 %v1513, %v1008
    %v1515 = vmul.f32 %v1514, %v1513
    %v1516 = vmul.f32 0.5, %v1515
    %v1517 = vsub.f32 1.5, %v1516
    %v1518 = vmul.f32 %v1513, %v1517
    %vm1519 = vweird.f32 %v1008
    %vm1520 = vweird.f32 %v1513
    %vm1521 = vmor %vm1519, %vm1520
    %v1522 = vsel %vm1521, %v1513, %v1518
    %v1523 = vrsqrt.pop %v1009
    %v1524 = vmul.f32 %v1523, %v1009
    %v1525 = vmul.f32 %v1524, %v1523
    %v1526 = vmul.f32 0.5, %v1525
    %v1527 = vsub.f32 1.5, %v1526
    %v1528 = vmul.f32 %v1523, %v1527
    %vm1529 = vweird.f32 %v1009
    %vm1530 = vweird.f32 %v1523
    %vm1531 = vmor %vm1529, %vm1530
    %v1532 = vsel %vm1531, %v1523, %v1528
    %v1533 = vrsqrt.pop %v1010
    %v1534 = vmul.f32 %v1533, %v1010
    %v1535 = vmul.f32 %v1534, %v1533
    %v1536 = vmul.f32 0.5, %v1535
    %v1537 = vsub.f32 1.5, %v1536
    %v1538 = vmul.f32 %v1533, %v1537
    %vm1539 = vweird.f32 %v1010
    %vm1540 = vweird.f32 %v1533
    %vm1541 = vmor %vm1539, %vm1540
    %v1542 = vsel %vm1541, %v1533, %v1538
    %v1543 = vrsqrt.pop %v1011
    %v1544 = vmul.f32 %v1543, %v1011
    %v1545 = vmul.f32 %v1544, %v1543
    %v1546 = vmul.f32 0.5, %v1545
    %v1547 = vsub.f32 1.5, %v1546
    %v1548 = vmul.f32 %v1543, %v1547
    %vm1549 = vweird.f32 %v1011
    %vm1550 = vweird.f32 %v1543
    %vm1551 = vmor %vm1549, %vm1550
    %v1552 = vsel %vm1551, %v1543, %v1548
    %v1553 = vrsqrt.pop %v1012
    %v1554 = vmul.f32 %v1553, %v1012
    %v1555 = vmul.f32 %v1554, %v1553
    %v1556 = vmul.f32 0.5, %v1555
    %v1557 = vsub.f32 1.5, %v1556
    %v1558 = vmul.f32 %v1553, %v1557
    %vm1559 = vweird.f32 %v1012
    %vm1560 = vweird.f32 %v1553
    %vm1561 = vmor %vm1559, %vm1560
    %v1562 = vsel %vm1561, %v1553, %v1558
    %v1563 = vrsqrt.pop %v1013
    %v1564 = vmul.f32 %v1563, %v1013
    %v1565 = vmul.f32 %v1564, %v1563
    %v1566 = vmul.f32 0.5, %v1565
    %v1567 = vsub.f32 1.5, %v1566
    %v1568 = vmul.f32 %v1563, %v1567
    %vm1569 = vweird.f32 %v1013
    %vm1570 = vweird.f32 %v1563
    %vm1571 = vmor %vm1569, %vm1570
    %v1572 = vsel %vm1571, %v1563, %v1568
    %v1573 = vrsqrt.pop %v1014
    %v1574 = vmul.f32 %v1573, %v1014
    %v1575 = vmul.f32 %v1574, %v1573
    %v1576 = vmul.f32 0.5, %v1575
    %v1577 = vsub.f32 1.5, %v1576
    %v1578 = vmul.f32 %v1573, %v1577
    %vm1579 = vweird.f32 %v1014
    %vm1580 = vweird.f32 %v1573
    %vm1581 = vmor %vm1579, %vm1580
    %v1582 = vsel %vm1581, %v1573, %v1578
    %v1583 = vrsqrt.pop %v1015
    %v1584 = vmul.f32 %v1583, %v1015
    %v1585 = vmul.f32 %v1584, %v1583
    %v1586 = vmul.f32 0.5, %v1585
    %v1587 = vsub.f32 1.5, %v1586
    %v1588 = vmul.f32 %v1583, %v1587
    %vm1589 = vweird.f32 %v1015
    %vm1590 = vweird.f32 %v1583
    %vm1591 = vmor %vm1589, %vm1590
    %v1592 = vsel %vm1591, %v1583, %v1588
    %v1593 = vrsqrt.pop %v1016
    %v1594 = vmul.f32 %v1593, %v1016
    %v1595 = vmul.f32 %v1594, %v1593
    %v1596 = vmul.f32 0.5, %v1595
    %v1597 = vsub.f32 1.5, %v1596
    %v1598 = vmul.f32 %v1593, %v1597
    %vm1599 = vweird.f32 %v1016
    %vm1600 = vweird.f32 %v1593
    %vm1601 = vmor %vm1599, %vm1600
    %v1602 = vsel %vm1601, %v1593, %v1598
    %v1603 = vrsqrt.pop %v1017
    %v1604 = vmul.f32 %v1603, %v1017
    %v1605 = vmul.f32 %v1604, %v1603
    %v1606 = vmul.f32 0.5, %v1605
    %v1607 = vsub.f32 1.5, %v1606
    %v1608 = vmul.f32 %v1603, %v1607
    %vm1609 = vweird.f32 %v1017
    %vm1610 = vweird.f32 %v1603
    %vm1611 = vmor %vm1609, %vm1610
    %v1612 = vsel %vm1611, %v1603, %v1608
    %v1613 = vrsqrt.pop %v1018
    %v1614 = vmul.f32 %v1613, %v1018
    %v1615 = vmul.f32 %v1614, %v1613
    %v1616 = vmul.f32 0.5, %v1615
    %v1617 = vsub.f32 1.5, %v1616
    %v1618 = vmul.f32 %v1613, %v1617
    %vm1619 = vweird.f32 %v1018
    %vm1620 = vweird.f32 %v1613
    %vm1621 = vmor %vm1619, %vm1620
    %v1622 = vsel %vm1621, %v1613, %v1618
    %v1623 = vrsqrt.pop %v1019
    %v1624 = vmul.f32 %v1623, %v1019
    %v1625 = vmul.f32 %v1624, %v1623
    %v1626 = vmul.f32 0.5, %v1625
    %v1627 = vsub.f32 1.5, %v1626
    %v1628 = vmul.f32 %v1623, %v1627
    %vm1629 = vweird.f32 %v1019
    %vm1630 = vweird.f32 %v1623
    %vm1631 = vmor %vm1629, %vm1630
    %v1632 = vsel %vm1631, %v1623, %v1628
    %v1633 = vrsqrt.pop %v1020
    %v1634 = vmul.f32 %v1633, %v1020
    %v1635 = vmul.f32 %v1634, %v1633
    %v1636 = vmul.f32 0.5, %v1635
    %v1637 = vsub.f32 1.5, %v1636
    %v1638 = vmul.f32 %v1633, %v1637
    %vm1639 = vweird.f32 %v1020
    %vm1640 = vweird.f32 %v1633
    %vm1641 = vmor %vm1639, %vm1640
    %v1642 = vsel %vm1641, %v1633, %v1638
    %v1643 = vrsqrt.pop %v1021
    %v1644 = vmul.f32 %v1643, %v1021
    %v1645 = vmul.f32 %v1644, %v1643
    %v1646 = vmul.f32 0.5, %v1645
    %v1647 = vsub.f32 1.5, %v1646
    %v1648 = vmul.f32 %v1643, %v1647
    %vm1649 = vweird.f32 %v1021
    %vm1650 = vweird.f32 %v1643
    %vm1651 = vmor %vm1649, %vm1650
    %v1652 = vsel %vm1651, %v1643, %v1648
    %v1653 = vrsqrt.pop %v1022
    %v1654 = vmul.f32 %v1653, %v1022
    %v1655 = vmul.f32 %v1654, %v1653
    %v1656 = vmul.f32 0.5, %v1655
    %v1657 = vsub.f32 1.5, %v1656
    %v1658 = vmul.f32 %v1653, %v1657
    %vm1659 = vweird.f32 %v1022
    %vm1660 = vweird.f32 %v1653
    %vm1661 = vmor %vm1659, %vm1660
    %v1662 = vsel %vm1661, %v1653, %v1658
    %v1663 = vmul.f32 %v639, %v1032
    %v1664 = vmul.f32 %v640, %v1042
    %v1665 = vmul.f32 %v641, %v1052
    %v1666 = vmul.f32 %v642, %v1062
    %v1667 = vmul.f32 %v643, %v1072
    %v1668 = vmul.f32 %v644, %v1082
    %v1669 = vmul.f32 %v645, %v1092
    %v1670 = vmul.f32 %v646, %v1102
    %v1671 = vmul.f32 %v647, %v1112
    %v1672 = vmul.f32 %v648, %v1122
    %v1673 = vmul.f32 %v649, %v1132
    %v1674 = vmul.f32 %v650, %v1142
    %v1675 = vmul.f32 %v651, %v1152
    %v1676 = vmul.f32 %v652, %v1162
    %v1677 = vmul.f32 %v653, %v1172
    %v1678 = vmul.f32 %v654, %v1182
    %v1679 = vmul.f32 %v655, %v1192
    %v1680 = vmul.f32 %v656, %v1202
    %v1681 = vmul.f32 %v657, %v1212
    %v1682 = vmul.f32 %v658, %v1222
    %v1683 = vmul.f32 %v659, %v1232
    %v1684 = vmul.f32 %v660, %v1242
    %v1685 = vmul.f32 %v661, %v1252
    %v1686 = vmul.f32 %v662, %v1262
    %v1687 = vmul.f32 %v663, %v1272
    %v1688 = vmul.f32 %v664, %v1282
    %v1689 = vmul.f32 %v665, %v1292
    %v1690 = vmul.f32 %v666, %v1302
    %v1691 = vmul.f32 %v667, %v1312
    %v1692 = vmul.f32 %v668, %v1322
    %v1693 = vmul.f32 %v669, %v1332
    %v1694 = vmul.f32 %v670, %v1342
    %v1695 = vmul.f32 %v671, %v1352
    %v1696 = vmul.f32 %v672, %v1362
    %v1697 = vmul.f32 %v673, %v1372
    %v1698 = vmul.f32 %v674, %v1382
    %v1699 = vmul.f32 %v675, %v1392
    %v1700 = vmul.f32 %v676, %v1402
    %v1701 = vmul.f32 %v677, %v1412
    %v1702 = vmul.f32 %v678, %v1422
    %v1703 = vmul.f32 %v679, %v1432
    %v1704 = vmul.f32 %v680, %v1442
    %v1705 = vmul.f32 %v681, %v1452
    %v1706 = vmul.f32 %v682, %v1462
    %v1707 = vmul.f32 %v683, %v1472
    %v1708 = vmul.f32 %v684, %v1482
    %v1709 = vmul.f32 %v685, %v1492
    %v1710 = vmul.f32 %v686, %v1502
    %v1711 = vmul.f32 %v687, %v1512
    %v1712 = vmul.f32 %v688, %v1522
    %v1713 = vmul.f32 %v689, %v1532
    %v1714 = vmul.f32 %v690, %v1542
    %v1715 = vmul.f32 %v691, %v1552
    %v1716 = vmul.f32 %v692, %v1562
    %v1717 = vmul.f32 %v693, %v1572
    %v1718 = vmul.f32 %v694, %v1582
    %v1719 = vmul.f32 %v695, %v1592
    %v1720 = vmul.f32 %v696, %v1602
    %v1721 = vmul.f32 %v697, %v1612
    %v1722 = vmul.f32 %v698, %v1622
    %v1723 = vmul.f32 %v699, %v1632
    %v1724 = vmul.f32 %v700, %v1642
    %v1725 = vmul.f32 %v701, %v1652
    %v1726 = vmul.f32 %v702, %v1662
    %v1727 = vperm.slane %v105, 0
    %v1728 = vmul.f32 %v1663, %v1727
    %v1729 = vmul.f32 %v1664, %v1727
    %v1730 = vmul.f32 %v1665, %v1727
    %v1731 = vmul.f32 %v1666, %v1727
    %v1732 = vmul.f32 %v1667, %v1727
    %v1733 = vmul.f32 %v1668, %v1727
    %v1734 = vmul.f32 %v1669, %v1727
    %v1735 = vmul.f32 %v1670, %v1727
    %v1736 = vmul.f32 %v1671, %v1727
    %v1737 = vmul.f32 %v1672, %v1727
    %v1738 = vmul.f32 %v1673, %v1727
    %v1739 = vmul.f32 %v1674, %v1727
    %v1740 = vmul.f32 %v1675, %v1727
    %v1741 = vmul.f32 %v1676, %v1727
    %v1742 = vmul.f32 %v1677, %v1727
    %v1743 = vmul.f32 %v1678, %v1727
    %v1744 = vmul.f32 %v1679, %v1727
    %v1745 = vmul.f32 %v1680, %v1727
    %v1746 = vmul.f32 %v1681, %v1727
    %v1747 = vmul.f32 %v1682, %v1727
    %v1748 = vmul.f32 %v1683, %v1727
    %v1749 = vmul.f32 %v1684, %v1727
    %v1750 = vmul.f32 %v1685, %v1727
    %v1751 = vmul.f32 %v1686, %v1727
    %v1752 = vmul.f32 %v1687, %v1727
    %v1753 = vmul.f32 %v1688, %v1727
    %v1754 = vmul.f32 %v1689, %v1727
    %v1755 = vmul.f32 %v1690, %v1727
    %v1756 = vmul.f32 %v1691, %v1727
    %v1757 = vmul.f32 %v1692, %v1727
    %v1758 = vmul.f32 %v1693, %v1727
    %v1759 = vmul.f32 %v1694, %v1727
    %v1760 = vmul.f32 %v1695, %v1727
    %v1761 = vmul.f32 %v1696, %v1727
    %v1762 = vmul.f32 %v1697, %v1727
    %v1763 = vmul.f32 %v1698, %v1727
    %v1764 = vmul.f32 %v1699, %v1727
    %v1765 = vmul.f32 %v1700, %v1727
    %v1766 = vmul.f32 %v1701, %v1727
    %v1767 = vmul.f32 %v1702, %v1727
    %v1768 = vmul.f32 %v1703, %v1727
    %v1769 = vmul.f32 %v1704, %v1727
    %v1770 = vmul.f32 %v1705, %v1727
    %v1771 = vmul.f32 %v1706, %v1727
    %v1772 = vmul.f32 %v1707, %v1727
    %v1773 = vmul.f32 %v1708, %v1727
    %v1774 = vmul.f32 %v1709, %v1727
    %v1775 = vmul.f32 %v1710, %v1727
    %v1776 = vmul.f32 %v1711, %v1727
    %v1777 = vmul.f32 %v1712, %v1727
    %v1778 = vmul.f32 %v1713, %v1727
    %v1779 = vmul.f32 %v1714, %v1727
    %v1780 = vmul.f32 %v1715, %v1727
    %v1781 = vmul.f32 %v1716, %v1727
    %v1782 = vmul.f32 %v1717, %v1727
    %v1783 = vmul.f32 %v1718, %v1727
    %v1784 = vmul.f32 %v1719, %v1727
    %v1785 = vmul.f32 %v1720, %v1727
    %v1786 = vmul.f32 %v1721, %v1727
    %v1787 = vmul.f32 %v1722, %v1727
    %v1788 = vmul.f32 %v1723, %v1727
    %v1789 = vmul.f32 %v1724, %v1727
    %v1790 = vmul.f32 %v1725, %v1727
    %v1791 = vmul.f32 %v1726, %v1727
    %v1792 = vperm.slane %v106, 0
    %v1793 = vadd.f32 %v1728, %v1792
    %v1794 = vadd.f32 %v1729, %v1792
    %v1795 = vadd.f32 %v1730, %v1792
    %v1796 = vadd.f32 %v1731, %v1792
    %v1797 = vadd.f32 %v1732, %v1792
    %v1798 = vadd.f32 %v1733, %v1792
    %v1799 = vadd.f32 %v1734, %v1792
    %v1800 = vadd.f32 %v1735, %v1792
    %v1801 = vadd.f32 %v1736, %v1792
    %v1802 = vadd.f32 %v1737, %v1792
    %v1803 = vadd.f32 %v1738, %v1792
    %v1804 = vadd.f32 %v1739, %v1792
    %v1805 = vadd.f32 %v1740, %v1792
    %v1806 = vadd.f32 %v1741, %v1792
    %v1807 = vadd.f32 %v1742, %v1792
    %v1808 = vadd.f32 %v1743, %v1792
    %v1809 = vadd.f32 %v1744, %v1792
    %v1810 = vadd.f32 %v1745, %v1792
    %v1811 = vadd.f32 %v1746, %v1792
    %v1812 = vadd.f32 %v1747, %v1792
    %v1813 = vadd.f32 %v1748, %v1792
    %v1814 = vadd.f32 %v1749, %v1792
    %v1815 = vadd.f32 %v1750, %v1792
    %v1816 = vadd.f32 %v1751, %v1792
    %v1817 = vadd.f32 %v1752, %v1792
    %v1818 = vadd.f32 %v1753, %v1792
    %v1819 = vadd.f32 %v1754, %v1792
    %v1820 = vadd.f32 %v1755, %v1792
    %v1821 = vadd.f32 %v1756, %v1792
    %v1822 = vadd.f32 %v1757, %v1792
    %v1823 = vadd.f32 %v1758, %v1792
    %v1824 = vadd.f32 %v1759, %v1792
    %v1825 = vadd.f32 %v1760, %v1792
    %v1826 = vadd.f32 %v1761, %v1792
    %v1827 = vadd.f32 %v1762, %v1792
    %v1828 = vadd.f32 %v1763, %v1792
    %v1829 = vadd.f32 %v1764, %v1792
    %v1830 = vadd.f32 %v1765, %v1792
    %v1831 = vadd.f32 %v1766, %v1792
    %v1832 = vadd.f32 %v1767, %v1792
    %v1833 = vadd.f32 %v1768, %v1792
    %v1834 = vadd.f32 %v1769, %v1792
    %v1835 = vadd.f32 %v1770, %v1792
    %v1836 = vadd.f32 %v1771, %v1792
    %v1837 = vadd.f32 %v1772, %v1792
    %v1838 = vadd.f32 %v1773, %v1792
    %v1839 = vadd.f32 %v1774, %v1792
    %v1840 = vadd.f32 %v1775, %v1792
    %v1841 = vadd.f32 %v1776, %v1792
    %v1842 = vadd.f32 %v1777, %v1792
    %v1843 = vadd.f32 %v1778, %v1792
    %v1844 = vadd.f32 %v1779, %v1792
    %v1845 = vadd.f32 %v1780, %v1792
    %v1846 = vadd.f32 %v1781, %v1792
    %v1847 = vadd.f32 %v1782, %v1792
    %v1848 = vadd.f32 %v1783, %v1792
    %v1849 = vadd.f32 %v1784, %v1792
    %v1850 = vadd.f32 %v1785, %v1792
    %v1851 = vadd.f32 %v1786, %v1792
    %v1852 = vadd.f32 %v1787, %v1792
    %v1853 = vadd.f32 %v1788, %v1792
    %v1854 = vadd.f32 %v1789, %v1792
    %v1855 = vadd.f32 %v1790, %v1792
    %v1856 = vadd.f32 %v1791, %v1792
    %v1857 = vtanh.pop %v1793
    %v1858 = vtanh.pop %v1794
    %v1859 = vtanh.pop %v1795
    %v1860 = vtanh.pop %v1796
    %v1861 = vtanh.pop %v1797
    %v1862 = vtanh.pop %v1798
    %v1863 = vtanh.pop %v1799
    %v1864 = vtanh.pop %v1800
    %v1865 = vtanh.pop %v1801
    %v1866 = vtanh.pop %v1802
    %v1867 = vtanh.pop %v1803
    %v1868 = vtanh.pop %v1804
    %v1869 = vtanh.pop %v1805
    %v1870 = vtanh.pop %v1806
    %v1871 = vtanh.pop %v1807
    %v1872 = vtanh.pop %v1808
    %v1873 = vtanh.pop %v1809
    %v1874 = vtanh.pop %v1810
    %v1875 = vtanh.pop %v1811
    %v1876 = vtanh.pop %v1812
    %v1877 = vtanh.pop %v1813
    %v1878 = vtanh.pop %v1814
    %v1879 = vtanh.pop %v1815
    %v1880 = vtanh.pop %v1816
    %v1881 = vtanh.pop %v1817
    %v1882 = vtanh.pop %v1818
    %v1883 = vtanh.pop %v1819
    %v1884 = vtanh.pop %v1820
    %v1885 = vtanh.pop %v1821
    %v1886 = vtanh.pop %v1822
    %v1887 = vtanh.pop %v1823
    %v1888 = vtanh.pop %v1824
    %v1889 = vtanh.pop %v1825
    %v1890 = vtanh.pop %v1826
    %v1891 = vtanh.pop %v1827
    %v1892 = vtanh.pop %v1828
    %v1893 = vtanh.pop %v1829
    %v1894 = vtanh.pop %v1830
    %v1895 = vtanh.pop %v1831
    %v1896 = vtanh.pop %v1832
    %v1897 = vtanh.pop %v1833
    %v1898 = vtanh.pop %v1834
    %v1899 = vtanh.pop %v1835
    %v1900 = vtanh.pop %v1836
    %v1901 = vtanh.pop %v1837
    %v1902 = vtanh.pop %v1838
    %v1903 = vtanh.pop %v1839
    %v1904 = vtanh.pop %v1840
    %v1905 = vtanh.pop %v1841
    %v1906 = vtanh.pop %v1842
    %v1907 = vtanh.pop %v1843
    %v1908 = vtanh.pop %v1844
    %v1909 = vtanh.pop %v1845
    %v1910 = vtanh.pop %v1846
    %v1911 = vtanh.pop %v1847
    %v1912 = vtanh.pop %v1848
    %v1913 = vtanh.pop %v1849
    %v1914 = vtanh.pop %v1850
    %v1915 = vtanh.pop %v1851
    %v1916 = vtanh.pop %v1852
    %v1917 = vtanh.pop %v1853
    %v1918 = vtanh.pop %v1854
    %v1919 = vtanh.pop %v1855
    %v1920 = vtanh.pop %v1856
    %v1921 = vpack.c.bf16 %v1858, %v1857
    %v1922 = vpack.c.bf16 %v1860, %v1859
    %v1923 = vpack.c.bf16 %v1862, %v1861
    %v1924 = vpack.c.bf16 %v1864, %v1863
    %v1925 = vpack.c.bf16 %v1866, %v1865
    %v1926 = vpack.c.bf16 %v1868, %v1867
    %v1927 = vpack.c.bf16 %v1870, %v1869
    %v1928 = vpack.c.bf16 %v1872, %v1871
    %v1929 = vpack.c.bf16 %v1874, %v1873
    %v1930 = vpack.c.bf16 %v1876, %v1875
    %v1931 = vpack.c.bf16 %v1878, %v1877
    %v1932 = vpack.c.bf16 %v1880, %v1879
    %v1933 = vpack.c.bf16 %v1882, %v1881
    %v1934 = vpack.c.bf16 %v1884, %v1883
    %v1935 = vpack.c.bf16 %v1886, %v1885
    %v1936 = vpack.c.bf16 %v1888, %v1887
    %v1937 = vpack.c.bf16 %v1890, %v1889
    %v1938 = vpack.c.bf16 %v1892, %v1891
    %v1939 = vpack.c.bf16 %v1894, %v1893
    %v1940 = vpack.c.bf16 %v1896, %v1895
    %v1941 = vpack.c.bf16 %v1898, %v1897
    %v1942 = vpack.c.bf16 %v1900, %v1899
    %v1943 = vpack.c.bf16 %v1902, %v1901
    %v1944 = vpack.c.bf16 %v1904, %v1903
    %v1945 = vpack.c.bf16 %v1906, %v1905
    %v1946 = vpack.c.bf16 %v1908, %v1907
    %v1947 = vpack.c.bf16 %v1910, %v1909
    %v1948 = vpack.c.bf16 %v1912, %v1911
    %v1949 = vpack.c.bf16 %v1914, %v1913
    %v1950 = vpack.c.bf16 %v1916, %v1915
    %v1951 = vpack.c.bf16 %v1918, %v1917
    %v1952 = vpack.c.bf16 %v1920, %v1919
    %v1953 = vld [vmem:[#allocation9] sm:$0xf]
    %v1954 = vld [vmem:[#allocation9 + $0x4] sm:$0xf]
    %v1955 = vld [vmem:[#allocation9 + $0x8] sm:$0xf]
    %v1956 = vld [vmem:[#allocation9 + $0xc] sm:$0xf]
    %v1957 = vld [vmem:[#allocation9 + $0x10] sm:$0xf]
    %v1958 = vld [vmem:[#allocation9 + $0x14] sm:$0xf]
    %v1959 = vld [vmem:[#allocation9 + $0x18] sm:$0xf]
    %v1960 = vld [vmem:[#allocation9 + $0x1c] sm:$0xf]
    %v1961 = vld [vmem:[#allocation9 + $0x20] sm:$0xf]
    %v1962 = vld [vmem:[#allocation9 + $0x24] sm:$0xf]
    %v1963 = vld [vmem:[#allocation9 + $0x28] sm:$0xf]
    %v1964 = vld [vmem:[#allocation9 + $0x2c] sm:$0xf]
    %v1965 = vld [vmem:[#allocation9 + $0x30] sm:$0xf]
    %v1966 = vld [vmem:[#allocation9 + $0x34] sm:$0xf]
    %v1967 = vld [vmem:[#allocation9 + $0x38] sm:$0xf]
    %v1968 = vld [vmem:[#allocation9 + $0x3c] sm:$0xf]
    %v1969 = vperm.slane %v107, 0
    %v1986 = vunpack.c.l.b16 %v1953
    %v1987 = vunpack.c.l.b16 %v1954
    %v1988 = vunpack.c.l.b16 %v1955
    %v1989 = vunpack.c.l.b16 %v1956
    %v1990 = vunpack.c.l.b16 %v1957
    %v1991 = vunpack.c.l.b16 %v1958
    %v1992 = vunpack.c.l.b16 %v1959
    %v1993 = vunpack.c.l.b16 %v1960
    %v1994 = vunpack.c.l.b16 %v1961
    %v1995 = vunpack.c.l.b16 %v1962
    %v1996 = vunpack.c.l.b16 %v1963
    %v1997 = vunpack.c.l.b16 %v1964
    %v1998 = vunpack.c.l.b16 %v1965
    %v1999 = vunpack.c.l.b16 %v1966
    %v2000 = vunpack.c.l.b16 %v1967
    %v2001 = vunpack.c.l.b16 %v1968
    %v2002 = vpack.c.b16 %v1987, %v1986
    %v2003 = vpack.c.b16 %v1989, %v1988
    %v2004 = vpack.c.b16 %v1991, %v1990
    %v2005 = vpack.c.b16 %v1993, %v1992
    %v2006 = vpack.c.b16 %v1995, %v1994
    %v2007 = vpack.c.b16 %v1997, %v1996
    %v2008 = vpack.c.b16 %v1999, %v1998
    %v2009 = vpack.c.b16 %v2001, %v2000
    %2018 = vmatpush.bf16.msra.mxu0 %v2009
    %2019 = vmatpush.bf16.msra.mxu0 %v2008
    %2020 = vmatpush.bf16.msra.mxu0 %v2007
    %2021 = vmatpush.bf16.msra.mxu0 %v2006
    %2022 = vmatpush.bf16.msra.mxu0 %v2005
    %2023 = vmatpush.bf16.msra.mxu0 %v2004
    %2024 = vmatpush.bf16.msra.mxu0 %v2003
    %2025 = vmatpush.bf16.msra.mxu0 %v2002
    %2026 = vmatmul.bf16.gmra.mxu0 %v1921
    %v2027 = vpop.f32.mrf.mxu0
    %v2028 = vadd.f32 %v1969, %v2027
    %v2029 = vpop.f32.mrf.mxu0
    %v2030 = vadd.f32 %v1969, %v2029
    %2031 = vmatmul.bf16.gmra.mxu0 %v1922
    %v2032 = vpop.f32.mrf.mxu0
    %v2033 = vadd.f32 %v1969, %v2032
    %v2034 = vpop.f32.mrf.mxu0
    %v2035 = vadd.f32 %v1969, %v2034
    %2036 = vmatmul.bf16.gmra.mxu0 %v1923
    %v2037 = vpop.f32.mrf.mxu0
    %v2038 = vadd.f32 %v1969, %v2037
    %v2039 = vpop.f32.mrf.mxu0
    %v2040 = vadd.f32 %v1969, %v2039
    %2041 = vmatmul.bf16.gmra.mxu0 %v1924
    %v2042 = vpop.f32.mrf.mxu0
    %v2043 = vadd.f32 %v1969, %v2042
    %v2044 = vpop.f32.mrf.mxu0
    %v2045 = vadd.f32 %v1969, %v2044
    %2046 = vmatmul.bf16.gmra.mxu0 %v1925
    %v2047 = vpop.f32.mrf.mxu0
    %v2048 = vadd.f32 %v1969, %v2047
    %v2049 = vpop.f32.mrf.mxu0
    %v2050 = vadd.f32 %v1969, %v2049
    %2051 = vmatmul.bf16.gmra.mxu0 %v1926
    %v2052 = vpop.f32.mrf.mxu0
    %v2053 = vadd.f32 %v1969, %v2052
    %v2054 = vpop.f32.mrf.mxu0
    %v2055 = vadd.f32 %v1969, %v2054
    %2056 = vmatmul.bf16.gmra.mxu0 %v1927
    %v2057 = vpop.f32.mrf.mxu0
    %v2058 = vadd.f32 %v1969, %v2057
    %v2059 = vpop.f32.mrf.mxu0
    %v2060 = vadd.f32 %v1969, %v2059
    %2061 = vmatmul.bf16.gmra.mxu0 %v1928
    %v2062 = vpop.f32.mrf.mxu0
    %v2063 = vadd.f32 %v1969, %v2062
    %v2064 = vpop.f32.mrf.mxu0
    %v2065 = vadd.f32 %v1969, %v2064
    %2066 = vmatmul.bf16.gmra.mxu0 %v1929
    %v2067 = vpop.f32.mrf.mxu0
    %v2068 = vadd.f32 %v1969, %v2067
    %v2069 = vpop.f32.mrf.mxu0
    %v2070 = vadd.f32 %v1969, %v2069
    %2071 = vmatmul.bf16.gmra.mxu0 %v1930
    %v2072 = vpop.f32.mrf.mxu0
    %v2073 = vadd.f32 %v1969, %v2072
    %v2074 = vpop.f32.mrf.mxu0
    %v2075 = vadd.f32 %v1969, %v2074
    %2076 = vmatmul.bf16.gmra.mxu0 %v1931
    %v2077 = vpop.f32.mrf.mxu0
    %v2078 = vadd.f32 %v1969, %v2077
    %v2079 = vpop.f32.mrf.mxu0
    %v2080 = vadd.f32 %v1969, %v2079
    %2081 = vmatmul.bf16.gmra.mxu0 %v1932
    %v2082 = vpop.f32.mrf.mxu0
    %v2083 = vadd.f32 %v1969, %v2082
    %v2084 = vpop.f32.mrf.mxu0
    %v2085 = vadd.f32 %v1969, %v2084
    %2086 = vmatmul.bf16.gmra.mxu0 %v1933
    %v2087 = vpop.f32.mrf.mxu0
    %v2088 = vadd.f32 %v1969, %v2087
    %v2089 = vpop.f32.mrf.mxu0
    %v2090 = vadd.f32 %v1969, %v2089
    %2091 = vmatmul.bf16.gmra.mxu0 %v1934
    %v2092 = vpop.f32.mrf.mxu0
    %v2093 = vadd.f32 %v1969, %v2092
    %v2094 = vpop.f32.mrf.mxu0
    %v2095 = vadd.f32 %v1969, %v2094
    %2096 = vmatmul.bf16.gmra.mxu0 %v1935
    %v2097 = vpop.f32.mrf.mxu0
    %v2098 = vadd.f32 %v1969, %v2097
    %v2099 = vpop.f32.mrf.mxu0
    %v2100 = vadd.f32 %v1969, %v2099
    %2101 = vmatmul.bf16.gmra.mxu0 %v1936
    %v2102 = vpop.f32.mrf.mxu0
    %v2103 = vadd.f32 %v1969, %v2102
    %v2104 = vpop.f32.mrf.mxu0
    %v2105 = vadd.f32 %v1969, %v2104
    %2106 = vmatmul.bf16.gmra.mxu0 %v1937
    %v2107 = vpop.f32.mrf.mxu0
    %v2108 = vadd.f32 %v1969, %v2107
    %v2109 = vpop.f32.mrf.mxu0
    %v2110 = vadd.f32 %v1969, %v2109
    %2111 = vmatmul.bf16.gmra.mxu0 %v1938
    %v2112 = vpop.f32.mrf.mxu0
    %v2113 = vadd.f32 %v1969, %v2112
    %v2114 = vpop.f32.mrf.mxu0
    %v2115 = vadd.f32 %v1969, %v2114
    %2116 = vmatmul.bf16.gmra.mxu0 %v1939
    %v2117 = vpop.f32.mrf.mxu0
    %v2118 = vadd.f32 %v1969, %v2117
    %v2119 = vpop.f32.mrf.mxu0
    %v2120 = vadd.f32 %v1969, %v2119
    %2121 = vmatmul.bf16.gmra.mxu0 %v1940
    %v2122 = vpop.f32.mrf.mxu0
    %v2123 = vadd.f32 %v1969, %v2122
    %v2124 = vpop.f32.mrf.mxu0
    %v2125 = vadd.f32 %v1969, %v2124
    %2126 = vmatmul.bf16.gmra.mxu0 %v1941
    %v2127 = vpop.f32.mrf.mxu0
    %v2128 = vadd.f32 %v1969, %v2127
    %v2129 = vpop.f32.mrf.mxu0
    %v2130 = vadd.f32 %v1969, %v2129
    %2131 = vmatmul.bf16.gmra.mxu0 %v1942
    %v2132 = vpop.f32.mrf.mxu0
    %v2133 = vadd.f32 %v1969, %v2132
    %v2134 = vpop.f32.mrf.mxu0
    %v2135 = vadd.f32 %v1969, %v2134
    %2136 = vmatmul.bf16.gmra.mxu0 %v1943
    %v2137 = vpop.f32.mrf.mxu0
    %v2138 = vadd.f32 %v1969, %v2137
    %v2139 = vpop.f32.mrf.mxu0
    %v2140 = vadd.f32 %v1969, %v2139
    %2141 = vmatmul.bf16.gmra.mxu0 %v1944
    %v2142 = vpop.f32.mrf.mxu0
    %v2143 = vadd.f32 %v1969, %v2142
    %v2144 = vpop.f32.mrf.mxu0
    %v2145 = vadd.f32 %v1969, %v2144
    %2146 = vmatmul.bf16.gmra.mxu0 %v1945
    %v2147 = vpop.f32.mrf.mxu0
    %v2148 = vadd.f32 %v1969, %v2147
    %v2149 = vpop.f32.mrf.mxu0
    %v2150 = vadd.f32 %v1969, %v2149
    %2151 = vmatmul.bf16.gmra.mxu0 %v1946
    %v2152 = vpop.f32.mrf.mxu0
    %v2153 = vadd.f32 %v1969, %v2152
    %v2154 = vpop.f32.mrf.mxu0
    %v2155 = vadd.f32 %v1969, %v2154
    %2156 = vmatmul.bf16.gmra.mxu0 %v1947
    %v2157 = vpop.f32.mrf.mxu0
    %v2158 = vadd.f32 %v1969, %v2157
    %v2159 = vpop.f32.mrf.mxu0
    %v2160 = vadd.f32 %v1969, %v2159
    %2161 = vmatmul.bf16.gmra.mxu0 %v1948
    %v2162 = vpop.f32.mrf.mxu0
    %v2163 = vadd.f32 %v1969, %v2162
    %v2164 = vpop.f32.mrf.mxu0
    %v2165 = vadd.f32 %v1969, %v2164
    %2166 = vmatmul.bf16.gmra.mxu0 %v1949
    %v2167 = vpop.f32.mrf.mxu0
    %v2168 = vadd.f32 %v1969, %v2167
    %v2169 = vpop.f32.mrf.mxu0
    %v2170 = vadd.f32 %v1969, %v2169
    %2171 = vmatmul.bf16.gmra.mxu0 %v1950
    %v2172 = vpop.f32.mrf.mxu0
    %v2173 = vadd.f32 %v1969, %v2172
    %v2174 = vpop.f32.mrf.mxu0
    %v2175 = vadd.f32 %v1969, %v2174
    %2176 = vmatmul.bf16.gmra.mxu0 %v1951
    %v2177 = vpop.f32.mrf.mxu0
    %v2178 = vadd.f32 %v1969, %v2177
    %v2179 = vpop.f32.mrf.mxu0
    %v2180 = vadd.f32 %v1969, %v2179
    %2181 = vmatmul.bf16.gmra.mxu0 %v1952
    %v2182 = vpop.f32.mrf.mxu0
    %v2183 = vadd.f32 %v1969, %v2182
    %v2184 = vpop.f32.mrf.mxu0
    %v2185 = vadd.f32 %v1969, %v2184
    %2186 = vdwg.mxu0
    %v2187 = vmax.f32 %v2028, 0.0
    %v2188 = vmax.f32 %v2030, 0.0
    %v2189 = vmax.f32 %v2033, 0.0
    %v2190 = vmax.f32 %v2035, 0.0
    %v2191 = vmax.f32 %v2038, 0.0
    %v2192 = vmax.f32 %v2040, 0.0
    %v2193 = vmax.f32 %v2043, 0.0
    %v2194 = vmax.f32 %v2045, 0.0
    %v2195 = vmax.f32 %v2048, 0.0
    %v2196 = vmax.f32 %v2050, 0.0
    %v2197 = vmax.f32 %v2053, 0.0
    %v2198 = vmax.f32 %v2055, 0.0
    %v2199 = vmax.f32 %v2058, 0.0
    %v2200 = vmax.f32 %v2060, 0.0
    %v2201 = vmax.f32 %v2063, 0.0
    %v2202 = vmax.f32 %v2065, 0.0
    %v2203 = vmax.f32 %v2068, 0.0
    %v2204 = vmax.f32 %v2070, 0.0
    %v2205 = vmax.f32 %v2073, 0.0
    %v2206 = vmax.f32 %v2075, 0.0
    %v2207 = vmax.f32 %v2078, 0.0
    %v2208 = vmax.f32 %v2080, 0.0
    %v2209 = vmax.f32 %v2083, 0.0
    %v2210 = vmax.f32 %v2085, 0.0
    %v2211 = vmax.f32 %v2088, 0.0
    %v2212 = vmax.f32 %v2090, 0.0
    %v2213 = vmax.f32 %v2093, 0.0
    %v2214 = vmax.f32 %v2095, 0.0
    %v2215 = vmax.f32 %v2098, 0.0
    %v2216 = vmax.f32 %v2100, 0.0
    %v2217 = vmax.f32 %v2103, 0.0
    %v2218 = vmax.f32 %v2105, 0.0
    %v2219 = vmax.f32 %v2108, 0.0
    %v2220 = vmax.f32 %v2110, 0.0
    %v2221 = vmax.f32 %v2113, 0.0
    %v2222 = vmax.f32 %v2115, 0.0
    %v2223 = vmax.f32 %v2118, 0.0
    %v2224 = vmax.f32 %v2120, 0.0
    %v2225 = vmax.f32 %v2123, 0.0
    %v2226 = vmax.f32 %v2125, 0.0
    %v2227 = vmax.f32 %v2128, 0.0
    %v2228 = vmax.f32 %v2130, 0.0
    %v2229 = vmax.f32 %v2133, 0.0
    %v2230 = vmax.f32 %v2135, 0.0
    %v2231 = vmax.f32 %v2138, 0.0
    %v2232 = vmax.f32 %v2140, 0.0
    %v2233 = vmax.f32 %v2143, 0.0
    %v2234 = vmax.f32 %v2145, 0.0
    %v2235 = vmax.f32 %v2148, 0.0
    %v2236 = vmax.f32 %v2150, 0.0
    %v2237 = vmax.f32 %v2153, 0.0
    %v2238 = vmax.f32 %v2155, 0.0
    %v2239 = vmax.f32 %v2158, 0.0
    %v2240 = vmax.f32 %v2160, 0.0
    %v2241 = vmax.f32 %v2163, 0.0
    %v2242 = vmax.f32 %v2165, 0.0
    %v2243 = vmax.f32 %v2168, 0.0
    %v2244 = vmax.f32 %v2170, 0.0
    %v2245 = vmax.f32 %v2173, 0.0
    %v2246 = vmax.f32 %v2175, 0.0
    %v2247 = vmax.f32 %v2178, 0.0
    %v2248 = vmax.f32 %v2180, 0.0
    %v2249 = vmax.f32 %v2183, 0.0
    %v2250 = vmax.f32 %v2185, 0.0
    %v2251 = vpack.c.bf16 %v2188, %v2187
    %v2252 = vpack.c.bf16 %v2190, %v2189
    %v2253 = vpack.c.bf16 %v2192, %v2191
    %v2254 = vpack.c.bf16 %v2194, %v2193
    %v2255 = vpack.c.bf16 %v2196, %v2195
    %v2256 = vpack.c.bf16 %v2198, %v2197
    %v2257 = vpack.c.bf16 %v2200, %v2199
    %v2258 = vpack.c.bf16 %v2202, %v2201
    %v2259 = vpack.c.bf16 %v2204, %v2203
    %v2260 = vpack.c.bf16 %v2206, %v2205
    %v2261 = vpack.c.bf16 %v2208, %v2207
    %v2262 = vpack.c.bf16 %v2210, %v2209
    %v2263 = vpack.c.bf16 %v2212, %v2211
    %v2264 = vpack.c.bf16 %v2214, %v2213
    %v2265 = vpack.c.bf16 %v2216, %v2215
    %v2266 = vpack.c.bf16 %v2218, %v2217
    %v2267 = vpack.c.bf16 %v2220, %v2219
    %v2268 = vpack.c.bf16 %v2222, %v2221
    %v2269 = vpack.c.bf16 %v2224, %v2223
    %v2270 = vpack.c.bf16 %v2226, %v2225
    %v2271 = vpack.c.bf16 %v2228, %v2227
    %v2272 = vpack.c.bf16 %v2230, %v2229
    %v2273 = vpack.c.bf16 %v2232, %v2231
    %v2274 = vpack.c.bf16 %v2234, %v2233
    %v2275 = vpack.c.bf16 %v2236, %v2235
    %v2276 = vpack.c.bf16 %v2238, %v2237
    %v2277 = vpack.c.bf16 %v2240, %v2239
    %v2278 = vpack.c.bf16 %v2242, %v2241
    %v2279 = vpack.c.bf16 %v2244, %v2243
    %v2280 = vpack.c.bf16 %v2246, %v2245
    %v2281 = vpack.c.bf16 %v2248, %v2247
    %v2282 = vpack.c.bf16 %v2250, %v2249
    %v2283 = vld [vmem:[#allocation11] sm:$0xf]
    %v2284 = vld [vmem:[#allocation11 + $0x4] sm:$0xf]
    %v2285 = vld [vmem:[#allocation11 + $0x8] sm:$0xf]
    %v2286 = vld [vmem:[#allocation11 + $0xc] sm:$0xf]
    %v2287 = vld [vmem:[#allocation11 + $0x10] sm:$0xf]
    %v2288 = vld [vmem:[#allocation11 + $0x14] sm:$0xf]
    %v2289 = vld [vmem:[#allocation11 + $0x18] sm:$0xf]
    %v2290 = vld [vmem:[#allocation11 + $0x1c] sm:$0xf]
    %v2291 = vld [vmem:[#allocation11 + $0x20] sm:$0xf]
    %v2292 = vld [vmem:[#allocation11 + $0x24] sm:$0xf]
    %v2293 = vld [vmem:[#allocation11 + $0x28] sm:$0xf]
    %v2294 = vld [vmem:[#allocation11 + $0x2c] sm:$0xf]
    %v2295 = vld [vmem:[#allocation11 + $0x30] sm:$0xf]
    %v2296 = vld [vmem:[#allocation11 + $0x34] sm:$0xf]
    %v2297 = vld [vmem:[#allocation11 + $0x38] sm:$0xf]
    %v2298 = vld [vmem:[#allocation11 + $0x3c] sm:$0xf]
    %v2299 = vperm.slane %v108, 0
    %v2316 = vunpack.c.l.b16 %v2283
    %v2317 = vunpack.c.l.b16 %v2284
    %v2318 = vunpack.c.l.b16 %v2285
    %v2319 = vunpack.c.l.b16 %v2286
    %v2320 = vunpack.c.l.b16 %v2287
    %v2321 = vunpack.c.l.b16 %v2288
    %v2322 = vunpack.c.l.b16 %v2289
    %v2323 = vunpack.c.l.b16 %v2290
    %v2324 = vunpack.c.l.b16 %v2291
    %v2325 = vunpack.c.l.b16 %v2292
    %v2326 = vunpack.c.l.b16 %v2293
    %v2327 = vunpack.c.l.b16 %v2294
    %v2328 = vunpack.c.l.b16 %v2295
    %v2329 = vunpack.c.l.b16 %v2296
    %v2330 = vunpack.c.l.b16 %v2297
    %v2331 = vunpack.c.l.b16 %v2298
    %v2332 = vpack.c.b16 %v2317, %v2316
    %v2333 = vpack.c.b16 %v2319, %v2318
    %v2334 = vpack.c.b16 %v2321, %v2320
    %v2335 = vpack.c.b16 %v2323, %v2322
    %v2336 = vpack.c.b16 %v2325, %v2324
    %v2337 = vpack.c.b16 %v2327, %v2326
    %v2338 = vpack.c.b16 %v2329, %v2328
    %v2339 = vpack.c.b16 %v2331, %v2330
    %2348 = vmatpush.bf16.msra.mxu0 %v2339
    %2349 = vmatpush.bf16.msra.mxu0 %v2338
    %2350 = vmatpush.bf16.msra.mxu0 %v2337
    %2351 = vmatpush.bf16.msra.mxu0 %v2336
    %2352 = vmatpush.bf16.msra.mxu0 %v2335
    %2353 = vmatpush.bf16.msra.mxu0 %v2334
    %2354 = vmatpush.bf16.msra.mxu0 %v2333
    %2355 = vmatpush.bf16.msra.mxu0 %v2332
    %2356 = vmatmul.bf16.gmra.mxu0 %v2251
    %v2357 = vpop.f32.mrf.mxu0
    %v2358 = vadd.f32 %v2299, %v2357
    %v2359 = vpop.f32.mrf.mxu0
    %v2360 = vadd.f32 %v2299, %v2359
    %2361 = vmatmul.bf16.gmra.mxu0 %v2252
    %v2362 = vpop.f32.mrf.mxu0
    %v2363 = vadd.f32 %v2299, %v2362
    %v2364 = vpop.f32.mrf.mxu0
    %v2365 = vadd.f32 %v2299, %v2364
    %2366 = vmatmul.bf16.gmra.mxu0 %v2253
    %v2367 = vpop.f32.mrf.mxu0
    %v2368 = vadd.f32 %v2299, %v2367
    %v2369 = vpop.f32.mrf.mxu0
    %v2370 = vadd.f32 %v2299, %v2369
    %2371 = vmatmul.bf16.gmra.mxu0 %v2254
    %v2372 = vpop.f32.mrf.mxu0
    %v2373 = vadd.f32 %v2299, %v2372
    %v2374 = vpop.f32.mrf.mxu0
    %v2375 = vadd.f32 %v2299, %v2374
    %2376 = vmatmul.bf16.gmra.mxu0 %v2255
    %v2377 = vpop.f32.mrf.mxu0
    %v2378 = vadd.f32 %v2299, %v2377
    %v2379 = vpop.f32.mrf.mxu0
    %v2380 = vadd.f32 %v2299, %v2379
    %2381 = vmatmul.bf16.gmra.mxu0 %v2256
    %v2382 = vpop.f32.mrf.mxu0
    %v2383 = vadd.f32 %v2299, %v2382
    %v2384 = vpop.f32.mrf.mxu0
    %v2385 = vadd.f32 %v2299, %v2384
    %2386 = vmatmul.bf16.gmra.mxu0 %v2257
    %v2387 = vpop.f32.mrf.mxu0
    %v2388 = vadd.f32 %v2299, %v2387
    %v2389 = vpop.f32.mrf.mxu0
    %v2390 = vadd.f32 %v2299, %v2389
    %2391 = vmatmul.bf16.gmra.mxu0 %v2258
    %v2392 = vpop.f32.mrf.mxu0
    %v2393 = vadd.f32 %v2299, %v2392
    %v2394 = vpop.f32.mrf.mxu0
    %v2395 = vadd.f32 %v2299, %v2394
    %2396 = vmatmul.bf16.gmra.mxu0 %v2259
    %v2397 = vpop.f32.mrf.mxu0
    %v2398 = vadd.f32 %v2299, %v2397
    %v2399 = vpop.f32.mrf.mxu0
    %v2400 = vadd.f32 %v2299, %v2399
    %2401 = vmatmul.bf16.gmra.mxu0 %v2260
    %v2402 = vpop.f32.mrf.mxu0
    %v2403 = vadd.f32 %v2299, %v2402
    %v2404 = vpop.f32.mrf.mxu0
    %v2405 = vadd.f32 %v2299, %v2404
    %2406 = vmatmul.bf16.gmra.mxu0 %v2261
    %v2407 = vpop.f32.mrf.mxu0
    %v2408 = vadd.f32 %v2299, %v2407
    %v2409 = vpop.f32.mrf.mxu0
    %v2410 = vadd.f32 %v2299, %v2409
    %2411 = vmatmul.bf16.gmra.mxu0 %v2262
    %v2412 = vpop.f32.mrf.mxu0
    %v2413 = vadd.f32 %v2299, %v2412
    %v2414 = vpop.f32.mrf.mxu0
    %v2415 = vadd.f32 %v2299, %v2414
    %2416 = vmatmul.bf16.gmra.mxu0 %v2263
    %v2417 = vpop.f32.mrf.mxu0
    %v2418 = vadd.f32 %v2299, %v2417
    %v2419 = vpop.f32.mrf.mxu0
    %v2420 = vadd.f32 %v2299, %v2419
    %2421 = vmatmul.bf16.gmra.mxu0 %v2264
    %v2422 = vpop.f32.mrf.mxu0
    %v2423 = vadd.f32 %v2299, %v2422
    %v2424 = vpop.f32.mrf.mxu0
    %v2425 = vadd.f32 %v2299, %v2424
    %2426 = vmatmul.bf16.gmra.mxu0 %v2265
    %v2427 = vpop.f32.mrf.mxu0
    %v2428 = vadd.f32 %v2299, %v2427
    %v2429 = vpop.f32.mrf.mxu0
    %v2430 = vadd.f32 %v2299, %v2429
    %2431 = vmatmul.bf16.gmra.mxu0 %v2266
    %v2432 = vpop.f32.mrf.mxu0
    %v2433 = vadd.f32 %v2299, %v2432
    %v2434 = vpop.f32.mrf.mxu0
    %v2435 = vadd.f32 %v2299, %v2434
    %2436 = vmatmul.bf16.gmra.mxu0 %v2267
    %v2437 = vpop.f32.mrf.mxu0
    %v2438 = vadd.f32 %v2299, %v2437
    %v2439 = vpop.f32.mrf.mxu0
    %v2440 = vadd.f32 %v2299, %v2439
    %2441 = vmatmul.bf16.gmra.mxu0 %v2268
    %v2442 = vpop.f32.mrf.mxu0
    %v2443 = vadd.f32 %v2299, %v2442
    %v2444 = vpop.f32.mrf.mxu0
    %v2445 = vadd.f32 %v2299, %v2444
    %2446 = vmatmul.bf16.gmra.mxu0 %v2269
    %v2447 = vpop.f32.mrf.mxu0
    %v2448 = vadd.f32 %v2299, %v2447
    %v2449 = vpop.f32.mrf.mxu0
    %v2450 = vadd.f32 %v2299, %v2449
    %2451 = vmatmul.bf16.gmra.mxu0 %v2270
    %v2452 = vpop.f32.mrf.mxu0
    %v2453 = vadd.f32 %v2299, %v2452
    %v2454 = vpop.f32.mrf.mxu0
    %v2455 = vadd.f32 %v2299, %v2454
    %2456 = vmatmul.bf16.gmra.mxu0 %v2271
    %v2457 = vpop.f32.mrf.mxu0
    %v2458 = vadd.f32 %v2299, %v2457
    %v2459 = vpop.f32.mrf.mxu0
    %v2460 = vadd.f32 %v2299, %v2459
    %2461 = vmatmul.bf16.gmra.mxu0 %v2272
    %v2462 = vpop.f32.mrf.mxu0
    %v2463 = vadd.f32 %v2299, %v2462
    %v2464 = vpop.f32.mrf.mxu0
    %v2465 = vadd.f32 %v2299, %v2464
    %2466 = vmatmul.bf16.gmra.mxu0 %v2273
    %v2467 = vpop.f32.mrf.mxu0
    %v2468 = vadd.f32 %v2299, %v2467
    %v2469 = vpop.f32.mrf.mxu0
    %v2470 = vadd.f32 %v2299, %v2469
    %2471 = vmatmul.bf16.gmra.mxu0 %v2274
    %v2472 = vpop.f32.mrf.mxu0
    %v2473 = vadd.f32 %v2299, %v2472
    %v2474 = vpop.f32.mrf.mxu0
    %v2475 = vadd.f32 %v2299, %v2474
    %2476 = vmatmul.bf16.gmra.mxu0 %v2275
    %v2477 = vpop.f32.mrf.mxu0
    %v2478 = vadd.f32 %v2299, %v2477
    %v2479 = vpop.f32.mrf.mxu0
    %v2480 = vadd.f32 %v2299, %v2479
    %2481 = vmatmul.bf16.gmra.mxu0 %v2276
    %v2482 = vpop.f32.mrf.mxu0
    %v2483 = vadd.f32 %v2299, %v2482
    %v2484 = vpop.f32.mrf.mxu0
    %v2485 = vadd.f32 %v2299, %v2484
    %2486 = vmatmul.bf16.gmra.mxu0 %v2277
    %v2487 = vpop.f32.mrf.mxu0
    %v2488 = vadd.f32 %v2299, %v2487
    %v2489 = vpop.f32.mrf.mxu0
    %v2490 = vadd.f32 %v2299, %v2489
    %2491 = vmatmul.bf16.gmra.mxu0 %v2278
    %v2492 = vpop.f32.mrf.mxu0
    %v2493 = vadd.f32 %v2299, %v2492
    %v2494 = vpop.f32.mrf.mxu0
    %v2495 = vadd.f32 %v2299, %v2494
    %2496 = vmatmul.bf16.gmra.mxu0 %v2279
    %v2497 = vpop.f32.mrf.mxu0
    %v2498 = vadd.f32 %v2299, %v2497
    %v2499 = vpop.f32.mrf.mxu0
    %v2500 = vadd.f32 %v2299, %v2499
    %2501 = vmatmul.bf16.gmra.mxu0 %v2280
    %v2502 = vpop.f32.mrf.mxu0
    %v2503 = vadd.f32 %v2299, %v2502
    %v2504 = vpop.f32.mrf.mxu0
    %v2505 = vadd.f32 %v2299, %v2504
    %2506 = vmatmul.bf16.gmra.mxu0 %v2281
    %v2507 = vpop.f32.mrf.mxu0
    %v2508 = vadd.f32 %v2299, %v2507
    %v2509 = vpop.f32.mrf.mxu0
    %v2510 = vadd.f32 %v2299, %v2509
    %2511 = vmatmul.bf16.gmra.mxu0 %v2282
    %v2512 = vpop.f32.mrf.mxu0
    %v2513 = vadd.f32 %v2299, %v2512
    %v2514 = vpop.f32.mrf.mxu0
    %v2515 = vadd.f32 %v2299, %v2514
    %2516 = vdwg.mxu0
    %v2517 = vmax.f32 %v2358, 0.0
    %v2518 = vmax.f32 %v2360, 0.0
    %v2519 = vmax.f32 %v2363, 0.0
    %v2520 = vmax.f32 %v2365, 0.0
    %v2521 = vmax.f32 %v2368, 0.0
    %v2522 = vmax.f32 %v2370, 0.0
    %v2523 = vmax.f32 %v2373, 0.0
    %v2524 = vmax.f32 %v2375, 0.0
    %v2525 = vmax.f32 %v2378, 0.0
    %v2526 = vmax.f32 %v2380, 0.0
    %v2527 = vmax.f32 %v2383, 0.0
    %v2528 = vmax.f32 %v2385, 0.0
    %v2529 = vmax.f32 %v2388, 0.0
    %v2530 = vmax.f32 %v2390, 0.0
    %v2531 = vmax.f32 %v2393, 0.0
    %v2532 = vmax.f32 %v2395, 0.0
    %v2533 = vmax.f32 %v2398, 0.0
    %v2534 = vmax.f32 %v2400, 0.0
    %v2535 = vmax.f32 %v2403, 0.0
    %v2536 = vmax.f32 %v2405, 0.0
    %v2537 = vmax.f32 %v2408, 0.0
    %v2538 = vmax.f32 %v2410, 0.0
    %v2539 = vmax.f32 %v2413, 0.0
    %v2540 = vmax.f32 %v2415, 0.0
    %v2541 = vmax.f32 %v2418, 0.0
    %v2542 = vmax.f32 %v2420, 0.0
    %v2543 = vmax.f32 %v2423, 0.0
    %v2544 = vmax.f32 %v2425, 0.0
    %v2545 = vmax.f32 %v2428, 0.0
    %v2546 = vmax.f32 %v2430, 0.0
    %v2547 = vmax.f32 %v2433, 0.0
    %v2548 = vmax.f32 %v2435, 0.0
    %v2549 = vmax.f32 %v2438, 0.0
    %v2550 = vmax.f32 %v2440, 0.0
    %v2551 = vmax.f32 %v2443, 0.0
    %v2552 = vmax.f32 %v2445, 0.0
    %v2553 = vmax.f32 %v2448, 0.0
    %v2554 = vmax.f32 %v2450, 0.0
    %v2555 = vmax.f32 %v2453, 0.0
    %v2556 = vmax.f32 %v2455, 0.0
    %v2557 = vmax.f32 %v2458, 0.0
    %v2558 = vmax.f32 %v2460, 0.0
    %v2559 = vmax.f32 %v2463, 0.0
    %v2560 = vmax.f32 %v2465, 0.0
    %v2561 = vmax.f32 %v2468, 0.0
    %v2562 = vmax.f32 %v2470, 0.0
    %v2563 = vmax.f32 %v2473, 0.0
    %v2564 = vmax.f32 %v2475, 0.0
    %v2565 = vmax.f32 %v2478, 0.0
    %v2566 = vmax.f32 %v2480, 0.0
    %v2567 = vmax.f32 %v2483, 0.0
    %v2568 = vmax.f32 %v2485, 0.0
    %v2569 = vmax.f32 %v2488, 0.0
    %v2570 = vmax.f32 %v2490, 0.0
    %v2571 = vmax.f32 %v2493, 0.0
    %v2572 = vmax.f32 %v2495, 0.0
    %v2573 = vmax.f32 %v2498, 0.0
    %v2574 = vmax.f32 %v2500, 0.0
    %v2575 = vmax.f32 %v2503, 0.0
    %v2576 = vmax.f32 %v2505, 0.0
    %v2577 = vmax.f32 %v2508, 0.0
    %v2578 = vmax.f32 %v2510, 0.0
    %v2579 = vmax.f32 %v2513, 0.0
    %v2580 = vmax.f32 %v2515, 0.0
    %s2581 = sld [smem:[#allocation2]]
    %v2582 = vstv %s2581
    %2583 = vmatpush.xpose.msra.mxu0 %v2532
    %2584 = vmatpush.xpose.msra.mxu0 %v2531
    %2585 = vmatpush.xpose.msra.mxu0 %v2530
    %2586 = vmatpush.xpose.msra.mxu0 %v2529
    %2587 = vmatpush.xpose.msra.mxu0 %v2528
    %2588 = vmatpush.xpose.msra.mxu0 %v2527
    %2589 = vmatpush.xpose.msra.mxu0 %v2526
    %2590 = vmatpush.xpose.msra.mxu0 %v2525
    %2591 = vmatpush.xpose.msra.mxu0 %v2524
    %2592 = vmatpush.xpose.msra.mxu0 %v2523
    %2593 = vmatpush.xpose.msra.mxu0 %v2522
    %2594 = vmatpush.xpose.msra.mxu0 %v2521
    %2595 = vmatpush.xpose.msra.mxu0 %v2520
    %2596 = vmatpush.xpose.msra.mxu0 %v2519
    %2597 = vmatpush.xpose.msra.mxu0 %v2518
    %2598 = vmatpush.xpose.msra.mxu0 %v2517
    %2599 = vmatmul.f32.gmra.mxu0 %v109
    %v2600 = vpop.f32.mrf.mxu0
    %v2601 = vadd.f32 %v2582, %v2600
    %2602 = vdwg.mxu0
    %2603 = vmatpush.xpose.msra.mxu0 %v2548
    %2604 = vmatpush.xpose.msra.mxu0 %v2547
    %2605 = vmatpush.xpose.msra.mxu0 %v2546
    %2606 = vmatpush.xpose.msra.mxu0 %v2545
    %2607 = vmatpush.xpose.msra.mxu0 %v2544
    %2608 = vmatpush.xpose.msra.mxu0 %v2543
    %2609 = vmatpush.xpose.msra.mxu0 %v2542
    %2610 = vmatpush.xpose.msra.mxu0 %v2541
    %2611 = vmatpush.xpose.msra.mxu0 %v2540
    %2612 = vmatpush.xpose.msra.mxu0 %v2539
    %2613 = vmatpush.xpose.msra.mxu0 %v2538
    %2614 = vmatpush.xpose.msra.mxu0 %v2537
    %2615 = vmatpush.xpose.msra.mxu0 %v2536
    %2616 = vmatpush.xpose.msra.mxu0 %v2535
    %2617 = vmatpush.xpose.msra.mxu0 %v2534
    %2618 = vmatpush.xpose.msra.mxu0 %v2533
    %2619 = vmatmul.f32.gmra.mxu0 %v109
    %v2620 = vpop.f32.mrf.mxu0
    %v2621 = vadd.f32 %v2582, %v2620
    %2622 = vdwg.mxu0
    %2623 = vmatpush.xpose.msra.mxu0 %v2564
    %2624 = vmatpush.xpose.msra.mxu0 %v2563
    %2625 = vmatpush.xpose.msra.mxu0 %v2562
    %2626 = vmatpush.xpose.msra.mxu0 %v2561
    %2627 = vmatpush.xpose.msra.mxu0 %v2560
    %2628 = vmatpush.xpose.msra.mxu0 %v2559
    %2629 = vmatpush.xpose.msra.mxu0 %v2558
    %2630 = vmatpush.xpose.msra.mxu0 %v2557
    %2631 = vmatpush.xpose.msra.mxu0 %v2556
    %2632 = vmatpush.xpose.msra.mxu0 %v2555
    %2633 = vmatpush.xpose.msra.mxu0 %v2554
    %2634 = vmatpush.xpose.msra.mxu0 %v2553
    %2635 = vmatpush.xpose.msra.mxu0 %v2552
    %2636 = vmatpush.xpose.msra.mxu0 %v2551
    %2637 = vmatpush.xpose.msra.mxu0 %v2550
    %2638 = vmatpush.xpose.msra.mxu0 %v2549
    %2639 = vmatmul.f32.gmra.mxu0 %v109
    %v2640 = vpop.f32.mrf.mxu0
    %v2641 = vadd.f32 %v2582, %v2640
    %2642 = vdwg.mxu0
    %2643 = vmatpush.xpose.msra.mxu0 %v2580
    %2644 = vmatpush.xpose.msra.mxu0 %v2579
    %2645 = vmatpush.xpose.msra.mxu0 %v2578
    %2646 = vmatpush.xpose.msra.mxu0 %v2577
    %2647 = vmatpush.xpose.msra.mxu0 %v2576
    %2648 = vmatpush.xpose.msra.mxu0 %v2575
    %2649 = vmatpush.xpose.msra.mxu0 %v2574
    %2650 = vmatpush.xpose.msra.mxu0 %v2573
    %2651 = vmatpush.xpose.msra.mxu0 %v2572
    %2652 = vmatpush.xpose.msra.mxu0 %v2571
    %2653 = vmatpush.xpose.msra.mxu0 %v2570
    %2654 = vmatpush.xpose.msra.mxu0 %v2569
    %2655 = vmatpush.xpose.msra.mxu0 %v2568
    %2656 = vmatpush.xpose.msra.mxu0 %v2567
    %2657 = vmatpush.xpose.msra.mxu0 %v2566
    %2658 = vmatpush.xpose.msra.mxu0 %v2565
    %2659 = vmatmul.f32.gmra.mxu0 %v109
    %v2660 = vpop.f32.mrf.mxu0
    %v2661 = vadd.f32 %v2582, %v2660
    %2662 = vdwg.mxu0
    %v2667 = vrot.slane %v2621, 7
    %v2668 = vrot.slane %v2641, 6
    %v2669 = vrot.slane %v2661, 5
    %vm2670 = vcmask 1040384
    %v2671 = vsel %vm2670, %v2601, %v2667
    %vm2672 = vcmask 1042434
    %v2673 = vsel %vm2672, %v2668, %v2669
    %vm2674 = vcmask 1041408
    %v2675 = vsel %vm2674, %v2671, %v2673
    %v2677 = vlaneseq
    %vm2678 = vcmp.ge.s32.totalorder %v2677, 0
    %vm2679 = vcmp.lt.s32.totalorder %v2677, 512
    %vm2680 = vmand %vm2678, %vm2679
    %2681 = vst.msk [vmem:[#allocation12] sm:$0xf] %vm2680, %v2675
    // Predicated region
    $region50: #{tpu_custom_call.1} parent=1 // pred_check
      _
    $region51: #{tpu_custom_call.1} parent=1 // pred_check_branch
      %2683 = sbr.rel (0) target = $region53
    $region52: #{tpu_custom_call.1} parent=1 // pred_region
      %2685 = vsyncadd [#allocation5], 0
      %s2687 = sshll.u32 [#allocation12], 4
      %s2688 = int_to_ptr.vmem [resolvable:$true] %s2687
      %s2689 = sshll.u32 %s7, 4
      %s2690 = int_to_ptr.hbm [resolvable:$true] %s2689
      %2692 = dma.vmem_to_hbm [thread:$0]  %s2688, 64, %s2690, [#allocation5]
    $region53: #{tpu_custom_call.1} parent=1 // pred_fallthru
      _
    // Predicated region
    $region54: #{tpu_custom_call.1} parent=1 // pred_check
      _
    $region55: #{tpu_custom_call.1} parent=1 // pred_check_branch
      %2694 = sbr.rel (0) target = $region57
    $region56: #{tpu_custom_call.1} parent=1 // pred_region
      %2696 = dma.done [#allocation5], 64
    $region57: #{tpu_custom_call.1} parent=1 // pred_fallthru
      _
    %2697 = vsyncpa [#allocation4], 1
    %2698 = vsyncpa [#allocation7], 1
    %2699 = vsyncpa [#allocation10], 1
    %2700 = vsyncpa [#allocation5], 1

</llo_original>
